<compile_context>
chip_gen: v6e
topology: v6e:2x2x1
jax: 0.10.0
libtpu: 0.0.40
codegen_flags: <defaults>
</compile_context>

<pallas_src>
import functools

import jax
import jax.numpy as jnp
from jax import lax
from jax.experimental import pallas as pl
from jax.experimental.pallas import tpu as pltpu


# ---------------------------------------------------------------------------
# Fused kernel: per grid step, project one time block (both directions) and
# run Tb recurrence steps for both directions interleaved.
# ---------------------------------------------------------------------------
def birnn_fused_kernel(xf_ref, xb_ref, wih_f_ref, wih_b_ref, b_f_ref, b_b_ref,
                       whh_f_ref, whh_b_ref,
                       out_f_ref, out_b_ref,
                       pf_sc, pb_sc, hf_sc, hb_sc, *, time_block, batch):
    i = pl.program_id(0)

    # zero initial hidden states (ihs = zeros) at the first time block
    @pl.when(i == 0)
    def _():
        hf_sc[...] = jnp.zeros_like(hf_sc)
        hb_sc[...] = jnp.zeros_like(hb_sc)

    # Hoisted input projection for this block, both directions:
    # one (Tb*B, E) @ (E, H) GEMM each (bf16 operands, f32 accumulation),
    # bias (b_ih + b_hh) folded in here so the sequential loop has no bias add.
    pf_sc[...] = (jnp.dot(xf_ref[...], wih_f_ref[...],
                          preferred_element_type=jnp.float32) + b_f_ref[...])
    pb_sc[...] = (jnp.dot(xb_ref[...], wih_b_ref[...],
                          preferred_element_type=jnp.float32) + b_b_ref[...])

    hf = hf_sc[...]                                   # (B, H) f32 carry
    hb = hb_sc[...]
    whh_f = whh_f_ref[...]                            # (H, H) bf16
    whh_b = whh_b_ref[...]

    # Static unrolled loop over the Tb steps of this block (Tb <= 16).
    # xf/pf hold times [i*Tb, (i+1)*Tb); xb/pb hold the mirrored block
    # [T-(i+1)*Tb, T-i*Tb), so backward step s reads/writes local row Tb-1-s.
    for s in range(time_block):
        rf = s * batch
        rb = (time_block - 1 - s) * batch
        hf = jnp.tanh(pf_sc[pl.ds(rf, batch), :]
                      + jnp.dot(hf.astype(whh_f.dtype), whh_f,
                                preferred_element_type=jnp.float32))
        hb = jnp.tanh(pb_sc[pl.ds(rb, batch), :]
                      + jnp.dot(hb.astype(whh_b.dtype), whh_b,
                                preferred_element_type=jnp.float32))
        out_f_ref[pl.ds(rf, batch), :] = hf.astype(out_f_ref.dtype)
        out_b_ref[pl.ds(rb, batch), :] = hb.astype(out_b_ref.dtype)

    # carry hidden states to the next time block
    hf_sc[...] = hf
    hb_sc[...] = hb


# ---------------------------------------------------------------------------
# Device-aware sizing helpers
# ---------------------------------------------------------------------------
def _vmem_limit_bytes():
    """Generation-aware VMEM budget: ~96 MiB on 128 MiB v5e/v6e, ~48 MiB on
    64 MiB v7x; conservative 48 MiB fallback if the query is unavailable."""
    try:
        cap = int(pltpu.get_tpu_info().vmem_capacity_bytes)
    except Exception:
        cap = 64 * 1024 * 1024
    return int(min(cap * 3 // 4, 100 * 1024 * 1024))


def _pick_time_block(T, B, E, H, vmem_budget, max_tb=16):
    """Largest Tb <= max_tb with T % Tb == 0 that fits ~half the VMEM budget and
    keeps the flattened (Tb*B, .) blocks layout-legal (sublane multiple of 8,
    or the full array)."""
    bytes_per_step = B * (2 * 2 * E * 2      # x fwd+bwd blocks (bf16, double-buffered)
                          + 2 * 2 * H * 4    # out fwd+bwd blocks (f32, double-buffered)
                          + 2 * H * 4)       # proj scratch fwd+bwd (f32)
    cap = max(1, min(max_tb, (vmem_budget // 2) // max(bytes_per_step, 1)))
    for tb in range(min(T, cap), 0, -1):
        if T % tb == 0 and (tb == T or (tb * B) % 8 == 0):
            return tb
    return T   # always layout-legal fallback: one block covering the sequence


# ---------------------------------------------------------------------------
# Wrapper
# ---------------------------------------------------------------------------
def bidirectional_rnn(x, params, *, max_time_block=16,
                      compute_dtype=jnp.bfloat16):
    """x: (B, T, E) float32 batch-first. Returns (out (B,T,2H), final_hs (B,2H))."""
    B, T, E = x.shape
    H = params["whh_f"].shape[1]
    cd = compute_dtype

    # time-major flatten (free reshape after one small transpose) + operand cast
    x_tm = jnp.transpose(x, (1, 0, 2)).reshape(T * B, E).astype(cd)
    wih_f = params["wih_f"].astype(cd)
    wih_b = params["wih_b"].astype(cd)
    whh_f = params["whh_f"].astype(cd)
    whh_b = params["whh_b"].astype(cd)
    b_f = params["b_f"].astype(jnp.float32)
    b_b = params["b_b"].astype(jnp.float32)

    vmem_limit = _vmem_limit_bytes()
    Tb = _pick_time_block(T, B, E, H, vmem_limit, max_time_block)
    nb = T // Tb
    Rb = Tb * B                                      # flattened rows per block

    kernel = functools.partial(birnn_fused_kernel, time_block=Tb, batch=B)
    out_f2, out_b2 = pl.pallas_call(
        kernel,
        out_shape=(jax.ShapeDtypeStruct((T * B, H), jnp.float32),
                   jax.ShapeDtypeStruct((T * B, H), jnp.float32)),
        grid_spec=pltpu.PrefetchScalarGridSpec(
            num_scalar_prefetch=0,
            grid=(nb,),
            in_specs=[
                pl.BlockSpec((Rb, E), lambda i: (i, 0)),            # x fwd block
                pl.BlockSpec((Rb, E), lambda i: (nb - 1 - i, 0)),   # x bwd (mirrored)
                pl.BlockSpec((E, H), lambda i: (0, 0)),             # W_ih fwd
                pl.BlockSpec((E, H), lambda i: (0, 0)),             # W_ih bwd
                pl.BlockSpec((1, H), lambda i: (0, 0)),             # b fwd (b_ih+b_hh)
                pl.BlockSpec((1, H), lambda i: (0, 0)),             # b bwd
                pl.BlockSpec((H, H), lambda i: (0, 0)),             # W_hh fwd
                pl.BlockSpec((H, H), lambda i: (0, 0)),             # W_hh bwd
            ],
            out_specs=[
                pl.BlockSpec((Rb, H), lambda i: (i, 0)),            # out fwd
                pl.BlockSpec((Rb, H), lambda i: (nb - 1 - i, 0)),   # out bwd (mirrored)
            ],
            scratch_shapes=[
                pltpu.VMEM((Rb, H), jnp.float32),   # projected block, fwd
                pltpu.VMEM((Rb, H), jnp.float32),   # projected block, bwd
                pltpu.VMEM((B, H), jnp.float32),    # forward hidden carry
                pltpu.VMEM((B, H), jnp.float32),    # backward hidden carry
            ],
        ),
        compiler_params=pltpu.CompilerParams(
            dimension_semantics=("arbitrary",),      # recurrence => sequential
            vmem_limit_bytes=vmem_limit),
    )(x_tm, x_tm, wih_f, wih_b, b_f, b_b, whh_f, whh_b)

    out_f = out_f2.reshape(T, B, H)                  # free reshapes
    out_b = out_b2.reshape(T, B, H)
    # XLA fuses this concat+transpose into a single copy to (B, T, 2H).
    out = jnp.transpose(jnp.concatenate([out_f, out_b], axis=-1), (1, 0, 2))
    # hs[-2] == forward hidden at t=T-1, hs[-1] == backward hidden at t=0.
    final_hs = jnp.concatenate([out_f[-1], out_b[0]], axis=-1)     # (B, 2H)
    return out, final_hs


# ---------------------------------------------------------------------------
# Pure-JAX reference and parameter init
# ---------------------------------------------------------------------------
def reference_birnn(x, params):
    """Pure-JAX f32 reference (lax.scan), mirrors torch.nn.RNN bidirectional."""
    B, T, E = x.shape
    H = params["whh_f"].shape[1]

    def step(h, xt, wih, whh, b):
        h = jnp.tanh(xt @ wih + h @ whh + b)
        return h, h

    h0 = jnp.zeros((B, H), jnp.float32)
    x_tm = jnp.transpose(x, (1, 0, 2))
    hf_last, out_f = lax.scan(
        lambda h, xt: step(h, xt, params["wih_f"], params["whh_f"], params["b_f"]),
        h0, x_tm)
    hb_last, out_b_rev = lax.scan(
        lambda h, xt: step(h, xt, params["wih_b"], params["whh_b"], params["b_b"]),
        h0, x_tm[::-1])
    out_b = out_b_rev[::-1]
    out = jnp.transpose(jnp.concatenate([out_f, out_b], axis=-1), (1, 0, 2))
    final_hs = jnp.concatenate([hf_last, hb_last], axis=-1)
    return out, final_hs


def init_params(key, embed_dim, model_size, output_size):
    """Deterministic init matching PyTorch shapes; U(-1/sqrt(H), 1/sqrt(H))."""
    H, E = model_size, embed_dim
    k = 1.0 / jnp.sqrt(jnp.float32(H))
    keys = jax.random.split(key, 10)
    u = lambda kk, shape: jax.random.uniform(kk, shape, jnp.float32, -k, k)
    params = {
        # stored pre-transposed: W_ih is (E, H), W_hh is (H, H), so h' = x@W + h@W
        "wih_f": u(keys[0], (E, H)),
        "whh_f": u(keys[1], (H, H)),
        "b_f": (u(keys[2], (1, H)) + u(keys[3], (1, H))),   # b_ih + b_hh
        "wih_b": u(keys[4], (E, H)),
        "whh_b": u(keys[5], (H, H)),
        "b_b": (u(keys[6], (1, H)) + u(keys[7], (1, H))),
        # `fl` Linear(model_size*2, output_size) exists in __init__ but is not
        # used in forward(); initialized here only for shape fidelity.
        "fl_w": u(keys[8], (2 * H, output_size)),
        "fl_b": u(keys[9], (output_size,)),
    }
    return params


if __name__ == "__main__":
    B, T, E, H, OUT = 2, 8, 4, 32, 8

    key = jax.random.PRNGKey(0)
    kx, kp = jax.random.split(key)
    x = jax.random.normal(kx, (B, T, E), jnp.float32)
    params = init_params(kp, E, H, OUT)

    # Default (performance) path: bf16 operands, f32 accumulation.
    out, final_hs = jax.jit(bidirectional_rnn)(x, params)
    jax.block_until_ready((out, final_hs))

    out_ref, final_ref = reference_birnn(x, params)
    assert out.shape == (B, T, 2 * H) and final_hs.shape == (B, 2 * H)
    # bf16-operand kernel vs pure-f32 reference: loose tolerance.
    assert jnp.allclose(out, out_ref, atol=5e-2, rtol=5e-2)
    assert jnp.allclose(final_hs, final_ref, atol=5e-2, rtol=5e-2)

    # Exactness path: same kernel in f32 compute must match the f32 reference.
    out32, final32 = jax.jit(
        functools.partial(bidirectional_rnn, compute_dtype=jnp.float32))(x, params)
    jax.block_until_ready((out32, final32))
    assert jnp.allclose(out32, out_ref, atol=1e-4, rtol=1e-4)
    assert jnp.allclose(final32, final_ref, atol=1e-4, rtol=1e-4)

    print("KERNEL_OK")
</pallas_src>

<mosaic_0001>
module attributes {stable_mosaic.version = 11 : i64} {
  func.func @birnn_fused_kernel(%arg0: i32, %arg1: memref<16x4xbf16, #tpu.memory_space<vmem>>, %arg2: memref<16x4xbf16, #tpu.memory_space<vmem>>, %arg3: memref<4x32xbf16, #tpu.memory_space<vmem>>, %arg4: memref<4x32xbf16, #tpu.memory_space<vmem>>, %arg5: memref<1x32xf32, #tpu.memory_space<vmem>>, %arg6: memref<1x32xf32, #tpu.memory_space<vmem>>, %arg7: memref<32x32xbf16, #tpu.memory_space<vmem>>, %arg8: memref<32x32xbf16, #tpu.memory_space<vmem>>, %arg9: memref<16x32xf32, #tpu.memory_space<vmem>>, %arg10: memref<16x32xf32, #tpu.memory_space<vmem>>, %arg11: memref<16x32xf32, #tpu.memory_space<vmem>>, %arg12: memref<16x32xf32, #tpu.memory_space<vmem>>, %arg13: memref<2x32xf32, #tpu.memory_space<vmem>>, %arg14: memref<2x32xf32, #tpu.memory_space<vmem>>) attributes {dimension_semantics = [#tpu.dimension_semantics<arbitrary>], iteration_bounds = array<i64: 1>, scalar_prefetch = 0 : i64, scratch_operands = 4 : i64, tpu.core_type = #tpu.core_type<tc>, window_params = [{transform_indices = @transform_0, window_bounds = array<i64: 16, 4>}, {transform_indices = @transform_1, window_bounds = array<i64: 16, 4>}, {pipeline_mode = #tpu.pipeline_mode<synchronous>, transform_indices = @transform_2, window_bounds = array<i64: 4, 32>}, {pipeline_mode = #tpu.pipeline_mode<synchronous>, transform_indices = @transform_3, window_bounds = array<i64: 4, 32>}, {pipeline_mode = #tpu.pipeline_mode<synchronous>, transform_indices = @transform_4, window_bounds = array<i64: 1, 32>}, {pipeline_mode = #tpu.pipeline_mode<synchronous>, transform_indices = @transform_5, window_bounds = array<i64: 1, 32>}, {pipeline_mode = #tpu.pipeline_mode<synchronous>, transform_indices = @transform_6, window_bounds = array<i64: 32, 32>}, {pipeline_mode = #tpu.pipeline_mode<synchronous>, transform_indices = @transform_7, window_bounds = array<i64: 32, 32>}, {transform_indices = @transform_8, window_bounds = array<i64: 16, 32>}, {transform_indices = @transform_9, window_bounds = array<i64: 16, 32>}]} {
    %c0_i32 = arith.constant 0 : i32
    %0 = arith.cmpi eq, %arg0, %c0_i32 : i32
    %1 = arith.extui %0 : i1 to i32
    %c0_i32_0 = arith.constant 0 : i32
    %2 = arith.cmpi ne, %1, %c0_i32_0 : i32
    scf.if %2 {
      %cst_102 = arith.constant 0.000000e+00 : f32
      %119 = vector.broadcast %cst_102 : f32 to vector<2x32xf32>
      %c0_103 = arith.constant 0 : index
      %c0_104 = arith.constant 0 : index
      %120 = vector.load %arg13[%c0_103, %c0_104] : memref<2x32xf32, #tpu.memory_space<vmem>>, vector<2x32xf32>
      tpu.vector_store %arg13[%c0_103, %c0_104], %119 {strides = array<i32>} : memref<2x32xf32, #tpu.memory_space<vmem>>, vector<2x32xf32>,
      %cst_105 = arith.constant 0.000000e+00 : f32
      %121 = vector.broadcast %cst_105 : f32 to vector<2x32xf32>
      %c0_106 = arith.constant 0 : index
      %c0_107 = arith.constant 0 : index
      %122 = vector.load %arg14[%c0_106, %c0_107] : memref<2x32xf32, #tpu.memory_space<vmem>>, vector<2x32xf32>
      tpu.vector_store %arg14[%c0_106, %c0_107], %121 {strides = array<i32>} : memref<2x32xf32, #tpu.memory_space<vmem>>, vector<2x32xf32>,
    } else {
    }
    %c0 = arith.constant 0 : index
    %c0_1 = arith.constant 0 : index
    %3 = vector.load %arg1[%c0, %c0_1] : memref<16x4xbf16, #tpu.memory_space<vmem>>, vector<16x4xbf16>
    %c0_2 = arith.constant 0 : index
    %c0_3 = arith.constant 0 : index
    %4 = vector.load %arg3[%c0_2, %c0_3] : memref<4x32xbf16, #tpu.memory_space<vmem>>, vector<4x32xbf16>
    %cst = arith.constant dense<0.000000e+00> : vector<16x32xf32>
    %5 = tpu.matmul %3, %4, %cst {dimension_numbers = #tpu.dot_dimension_numbers<[1], [0], [0], [1], [0, 0, 1, 1], [], []>} : vector<16x4xbf16>, vector<4x32xbf16>, vector<16x32xf32> -> vector<16x32xf32>
    %c0_4 = arith.constant 0 : index
    %c0_5 = arith.constant 0 : index
    %6 = vector.load %arg5[%c0_4, %c0_5] : memref<1x32xf32, #tpu.memory_space<vmem>>, vector<1x32xf32>
    %7 = vector.broadcast %6 : vector<1x32xf32> to vector<16x32xf32>
    %8 = arith.addf %5, %7 : vector<16x32xf32>
    %c0_6 = arith.constant 0 : index
    %c0_7 = arith.constant 0 : index
    %9 = vector.load %arg11[%c0_6, %c0_7] : memref<16x32xf32, #tpu.memory_space<vmem>>, vector<16x32xf32>
    tpu.vector_store %arg11[%c0_6, %c0_7], %8 {strides = array<i32>} : memref<16x32xf32, #tpu.memory_space<vmem>>, vector<16x32xf32>,
    %c0_8 = arith.constant 0 : index
    %c0_9 = arith.constant 0 : index
    %10 = vector.load %arg2[%c0_8, %c0_9] : memref<16x4xbf16, #tpu.memory_space<vmem>>, vector<16x4xbf16>
    %c0_10 = arith.constant 0 : index
    %c0_11 = arith.constant 0 : index
    %11 = vector.load %arg4[%c0_10, %c0_11] : memref<4x32xbf16, #tpu.memory_space<vmem>>, vector<4x32xbf16>
    %cst_12 = arith.constant dense<0.000000e+00> : vector<16x32xf32>
    %12 = tpu.matmul %10, %11, %cst_12 {dimension_numbers = #tpu.dot_dimension_numbers<[1], [0], [0], [1], [0, 0, 1, 1], [], []>} : vector<16x4xbf16>, vector<4x32xbf16>, vector<16x32xf32> -> vector<16x32xf32>
    %c0_13 = arith.constant 0 : index
    %c0_14 = arith.constant 0 : index
    %13 = vector.load %arg6[%c0_13, %c0_14] : memref<1x32xf32, #tpu.memory_space<vmem>>, vector<1x32xf32>
    %14 = vector.broadcast %13 : vector<1x32xf32> to vector<16x32xf32>
    %15 = arith.addf %12, %14 : vector<16x32xf32>
    %c0_15 = arith.constant 0 : index
    %c0_16 = arith.constant 0 : index
    %16 = vector.load %arg12[%c0_15, %c0_16] : memref<16x32xf32, #tpu.memory_space<vmem>>, vector<16x32xf32>
    tpu.vector_store %arg12[%c0_15, %c0_16], %15 {strides = array<i32>} : memref<16x32xf32, #tpu.memory_space<vmem>>, vector<16x32xf32>,
    %c0_17 = arith.constant 0 : index
    %c0_18 = arith.constant 0 : index
    %17 = vector.load %arg13[%c0_17, %c0_18] : memref<2x32xf32, #tpu.memory_space<vmem>>, vector<2x32xf32>
    %c0_19 = arith.constant 0 : index
    %c0_20 = arith.constant 0 : index
    %18 = vector.load %arg14[%c0_19, %c0_20] : memref<2x32xf32, #tpu.memory_space<vmem>>, vector<2x32xf32>
    %c0_21 = arith.constant 0 : index
    %c0_22 = arith.constant 0 : index
    %19 = vector.load %arg7[%c0_21, %c0_22] : memref<32x32xbf16, #tpu.memory_space<vmem>>, vector<32x32xbf16>
    %c0_23 = arith.constant 0 : index
    %c0_24 = arith.constant 0 : index
    %20 = vector.load %arg8[%c0_23, %c0_24] : memref<32x32xbf16, #tpu.memory_space<vmem>>, vector<32x32xbf16>
    %c0_25 = arith.constant 0 : index
    %c0_26 = arith.constant 0 : index
    %21 = vector.load %arg11[%c0_25, %c0_26] : memref<16x32xf32, #tpu.memory_space<vmem>>, vector<2x32xf32>
    %22 = arith.truncf %17 : vector<2x32xf32> to vector<2x32xbf16>
    %cst_27 = arith.constant dense<0.000000e+00> : vector<2x32xf32>
    %23 = tpu.matmul %22, %19, %cst_27 {dimension_numbers = #tpu.dot_dimension_numbers<[1], [0], [0], [1], [0, 0, 1, 1], [], []>} : vector<2x32xbf16>, vector<32x32xbf16>, vector<2x32xf32> -> vector<2x32xf32>
    %24 = arith.addf %21, %23 : vector<2x32xf32>
    %25 = math.tanh %24 : vector<2x32xf32>
    %c14 = arith.constant 14 : index
    %c0_28 = arith.constant 0 : index
    %26 = vector.load %arg12[%c14, %c0_28] : memref<16x32xf32, #tpu.memory_space<vmem>>, vector<2x32xf32>
    %27 = arith.truncf %18 : vector<2x32xf32> to vector<2x32xbf16>
    %cst_29 = arith.constant dense<0.000000e+00> : vector<2x32xf32>
    %28 = tpu.matmul %27, %20, %cst_29 {dimension_numbers = #tpu.dot_dimension_numbers<[1], [0], [0], [1], [0, 0, 1, 1], [], []>} : vector<2x32xbf16>, vector<32x32xbf16>, vector<2x32xf32> -> vector<2x32xf32>
    %29 = arith.addf %26, %28 : vector<2x32xf32>
    %30 = math.tanh %29 : vector<2x32xf32>
    %c0_30 = arith.constant 0 : index
    %c0_31 = arith.constant 0 : index
    %31 = vector.load %arg9[%c0_30, %c0_31] : memref<16x32xf32, #tpu.memory_space<vmem>>, vector<2x32xf32>
    tpu.vector_store %arg9[%c0_30, %c0_31], %25 {strides = array<i32>} : memref<16x32xf32, #tpu.memory_space<vmem>>, vector<2x32xf32>,
    %c14_32 = arith.constant 14 : index
    %c0_33 = arith.constant 0 : index
    %32 = vector.load %arg10[%c14_32, %c0_33] : memref<16x32xf32, #tpu.memory_space<vmem>>, vector<2x32xf32>
    tpu.vector_store %arg10[%c14_32, %c0_33], %30 {strides = array<i32>} : memref<16x32xf32, #tpu.memory_space<vmem>>, vector<2x32xf32>,
    %c2 = arith.constant 2 : index
    %c0_34 = arith.constant 0 : index
    %33 = vector.load %arg11[%c2, %c0_34] : memref<16x32xf32, #tpu.memory_space<vmem>>, vector<2x32xf32>
    %34 = arith.truncf %25 : vector<2x32xf32> to vector<2x32xbf16>
    %cst_35 = arith.constant dense<0.000000e+00> : vector<2x32xf32>
    %35 = tpu.matmul %34, %19, %cst_35 {dimension_numbers = #tpu.dot_dimension_numbers<[1], [0], [0], [1], [0, 0, 1, 1], [], []>} : vector<2x32xbf16>, vector<32x32xbf16>, vector<2x32xf32> -> vector<2x32xf32>
    %36 = arith.addf %33, %35 : vector<2x32xf32>
    %37 = math.tanh %36 : vector<2x32xf32>
    %c12 = arith.constant 12 : index
    %c0_36 = arith.constant 0 : index
    %38 = vector.load %arg12[%c12, %c0_36] : memref<16x32xf32, #tpu.memory_space<vmem>>, vector<2x32xf32>
    %39 = arith.truncf %30 : vector<2x32xf32> to vector<2x32xbf16>
    %cst_37 = arith.constant dense<0.000000e+00> : vector<2x32xf32>
    %40 = tpu.matmul %39, %20, %cst_37 {dimension_numbers = #tpu.dot_dimension_numbers<[1], [0], [0], [1], [0, 0, 1, 1], [], []>} : vector<2x32xbf16>, vector<32x32xbf16>, vector<2x32xf32> -> vector<2x32xf32>
    %41 = arith.addf %38, %40 : vector<2x32xf32>
    %42 = math.tanh %41 : vector<2x32xf32>
    %c2_38 = arith.constant 2 : index
    %c0_39 = arith.constant 0 : index
    %43 = vector.load %arg9[%c2_38, %c0_39] : memref<16x32xf32, #tpu.memory_space<vmem>>, vector<2x32xf32>
    tpu.vector_store %arg9[%c2_38, %c0_39], %37 {strides = array<i32>} : memref<16x32xf32, #tpu.memory_space<vmem>>, vector<2x32xf32>,
    %c12_40 = arith.constant 12 : index
    %c0_41 = arith.constant 0 : index
    %44 = vector.load %arg10[%c12_40, %c0_41] : memref<16x32xf32, #tpu.memory_space<vmem>>, vector<2x32xf32>
    tpu.vector_store %arg10[%c12_40, %c0_41], %42 {strides = array<i32>} : memref<16x32xf32, #tpu.memory_space<vmem>>, vector<2x32xf32>,
    %c4 = arith.constant 4 : index
    %c0_42 = arith.constant 0 : index
    %45 = vector.load %arg11[%c4, %c0_42] : memref<16x32xf32, #tpu.memory_space<vmem>>, vector<2x32xf32>
    %46 = arith.truncf %37 : vector<2x32xf32> to vector<2x32xbf16>
    %cst_43 = arith.constant dense<0.000000e+00> : vector<2x32xf32>
    %47 = tpu.matmul %46, %19, %cst_43 {dimension_numbers = #tpu.dot_dimension_numbers<[1], [0], [0], [1], [0, 0, 1, 1], [], []>} : vector<2x32xbf16>, vector<32x32xbf16>, vector<2x32xf32> -> vector<2x32xf32>
    %48 = arith.addf %45, %47 : vector<2x32xf32>
    %49 = math.tanh %48 : vector<2x32xf32>
    %c10 = arith.constant 10 : index
    %c0_44 = arith.constant 0 : index
    %50 = vector.load %arg12[%c10, %c0_44] : memref<16x32xf32, #tpu.memory_space<vmem>>, vector<2x32xf32>
    %51 = arith.truncf %42 : vector<2x32xf32> to vector<2x32xbf16>
    %cst_45 = arith.constant dense<0.000000e+00> : vector<2x32xf32>
    %52 = tpu.matmul %51, %20, %cst_45 {dimension_numbers = #tpu.dot_dimension_numbers<[1], [0], [0], [1], [0, 0, 1, 1], [], []>} : vector<2x32xbf16>, vector<32x32xbf16>, vector<2x32xf32> -> vector<2x32xf32>
    %53 = arith.addf %50, %52 : vector<2x32xf32>
    %54 = math.tanh %53 : vector<2x32xf32>
    %c4_46 = arith.constant 4 : index
    %c0_47 = arith.constant 0 : index
    %55 = vector.load %arg9[%c4_46, %c0_47] : memref<16x32xf32, #tpu.memory_space<vmem>>, vector<2x32xf32>
    tpu.vector_store %arg9[%c4_46, %c0_47], %49 {strides = array<i32>} : memref<16x32xf32, #tpu.memory_space<vmem>>, vector<2x32xf32>,
    %c10_48 = arith.constant 10 : index
    %c0_49 = arith.constant 0 : index
    %56 = vector.load %arg10[%c10_48, %c0_49] : memref<16x32xf32, #tpu.memory_space<vmem>>, vector<2x32xf32>
    tpu.vector_store %arg10[%c10_48, %c0_49], %54 {strides = array<i32>} : memref<16x32xf32, #tpu.memory_space<vmem>>, vector<2x32xf32>,
    %c6 = arith.constant 6 : index
    %c0_50 = arith.constant 0 : index
    %57 = vector.load %arg11[%c6, %c0_50] : memref<16x32xf32, #tpu.memory_space<vmem>>, vector<2x32xf32>
    %58 = arith.truncf %49 : vector<2x32xf32> to vector<2x32xbf16>
    %cst_51 = arith.constant dense<0.000000e+00> : vector<2x32xf32>
    %59 = tpu.matmul %58, %19, %cst_51 {dimension_numbers = #tpu.dot_dimension_numbers<[1], [0], [0], [1], [0, 0, 1, 1], [], []>} : vector<2x32xbf16>, vector<32x32xbf16>, vector<2x32xf32> -> vector<2x32xf32>
    %60 = arith.addf %57, %59 : vector<2x32xf32>
    %61 = math.tanh %60 : vector<2x32xf32>
    %c8 = arith.constant 8 : index
    %c0_52 = arith.constant 0 : index
    %62 = vector.load %arg12[%c8, %c0_52] : memref<16x32xf32, #tpu.memory_space<vmem>>, vector<2x32xf32>
    %63 = arith.truncf %54 : vector<2x32xf32> to vector<2x32xbf16>
    %cst_53 = arith.constant dense<0.000000e+00> : vector<2x32xf32>
    %64 = tpu.matmul %63, %20, %cst_53 {dimension_numbers = #tpu.dot_dimension_numbers<[1], [0], [0], [1], [0, 0, 1, 1], [], []>} : vector<2x32xbf16>, vector<32x32xbf16>, vector<2x32xf32> -> vector<2x32xf32>
    %65 = arith.addf %62, %64 : vector<2x32xf32>
    %66 = math.tanh %65 : vector<2x32xf32>
    %c6_54 = arith.constant 6 : index
    %c0_55 = arith.constant 0 : index
    %67 = vector.load %arg9[%c6_54, %c0_55] : memref<16x32xf32, #tpu.memory_space<vmem>>, vector<2x32xf32>
    tpu.vector_store %arg9[%c6_54, %c0_55], %61 {strides = array<i32>} : memref<16x32xf32, #tpu.memory_space<vmem>>, vector<2x32xf32>,
    %c8_56 = arith.constant 8 : index
    %c0_57 = arith.constant 0 : index
    %68 = vector.load %arg10[%c8_56, %c0_57] : memref<16x32xf32, #tpu.memory_space<vmem>>, vector<2x32xf32>
    tpu.vector_store %arg10[%c8_56, %c0_57], %66 {strides = array<i32>} : memref<16x32xf32, #tpu.memory_space<vmem>>, vector<2x32xf32>,
    %c8_58 = arith.constant 8 : index
    %c0_59 = arith.constant 0 : index
    %69 = vector.load %arg11[%c8_58, %c0_59] : memref<16x32xf32, #tpu.memory_space<vmem>>, vector<2x32xf32>
    %70 = arith.truncf %61 : vector<2x32xf32> to vector<2x32xbf16>
    %cst_60 = arith.constant dense<0.000000e+00> : vector<2x32xf32>
    %71 = tpu.matmul %70, %19, %cst_60 {dimension_numbers = #tpu.dot_dimension_numbers<[1], [0], [0], [1], [0, 0, 1, 1], [], []>} : vector<2x32xbf16>, vector<32x32xbf16>, vector<2x32xf32> -> vector<2x32xf32>
    %72 = arith.addf %69, %71 : vector<2x32xf32>
    %73 = math.tanh %72 : vector<2x32xf32>
    %c6_61 = arith.constant 6 : index
    %c0_62 = arith.constant 0 : index
    %74 = vector.load %arg12[%c6_61, %c0_62] : memref<16x32xf32, #tpu.memory_space<vmem>>, vector<2x32xf32>
    %75 = arith.truncf %66 : vector<2x32xf32> to vector<2x32xbf16>
    %cst_63 = arith.constant dense<0.000000e+00> : vector<2x32xf32>
    %76 = tpu.matmul %75, %20, %cst_63 {dimension_numbers = #tpu.dot_dimension_numbers<[1], [0], [0], [1], [0, 0, 1, 1], [], []>} : vector<2x32xbf16>, vector<32x32xbf16>, vector<2x32xf32> -> vector<2x32xf32>
    %77 = arith.addf %74, %76 : vector<2x32xf32>
    %78 = math.tanh %77 : vector<2x32xf32>
    %c8_64 = arith.constant 8 : index
    %c0_65 = arith.constant 0 : index
    %79 = vector.load %arg9[%c8_64, %c0_65] : memref<16x32xf32, #tpu.memory_space<vmem>>, vector<2x32xf32>
    tpu.vector_store %arg9[%c8_64, %c0_65], %73 {strides = array<i32>} : memref<16x32xf32, #tpu.memory_space<vmem>>, vector<2x32xf32>,
    %c6_66 = arith.constant 6 : index
    %c0_67 = arith.constant 0 : index
    %80 = vector.load %arg10[%c6_66, %c0_67] : memref<16x32xf32, #tpu.memory_space<vmem>>, vector<2x32xf32>
    tpu.vector_store %arg10[%c6_66, %c0_67], %78 {strides = array<i32>} : memref<16x32xf32, #tpu.memory_space<vmem>>, vector<2x32xf32>,
    %c10_68 = arith.constant 10 : index
    %c0_69 = arith.constant 0 : index
    %81 = vector.load %arg11[%c10_68, %c0_69] : memref<16x32xf32, #tpu.memory_space<vmem>>, vector<2x32xf32>
    %82 = arith.truncf %73 : vector<2x32xf32> to vector<2x32xbf16>
    %cst_70 = arith.constant dense<0.000000e+00> : vector<2x32xf32>
    %83 = tpu.matmul %82, %19, %cst_70 {dimension_numbers = #tpu.dot_dimension_numbers<[1], [0], [0], [1], [0, 0, 1, 1], [], []>} : vector<2x32xbf16>, vector<32x32xbf16>, vector<2x32xf32> -> vector<2x32xf32>
    %84 = arith.addf %81, %83 : vector<2x32xf32>
    %85 = math.tanh %84 : vector<2x32xf32>
    %c4_71 = arith.constant 4 : index
    %c0_72 = arith.constant 0 : index
    %86 = vector.load %arg12[%c4_71, %c0_72] : memref<16x32xf32, #tpu.memory_space<vmem>>, vector<2x32xf32>
    %87 = arith.truncf %78 : vector<2x32xf32> to vector<2x32xbf16>
    %cst_73 = arith.constant dense<0.000000e+00> : vector<2x32xf32>
    %88 = tpu.matmul %87, %20, %cst_73 {dimension_numbers = #tpu.dot_dimension_numbers<[1], [0], [0], [1], [0, 0, 1, 1], [], []>} : vector<2x32xbf16>, vector<32x32xbf16>, vector<2x32xf32> -> vector<2x32xf32>
    %89 = arith.addf %86, %88 : vector<2x32xf32>
    %90 = math.tanh %89 : vector<2x32xf32>
    %c10_74 = arith.constant 10 : index
    %c0_75 = arith.constant 0 : index
    %91 = vector.load %arg9[%c10_74, %c0_75] : memref<16x32xf32, #tpu.memory_space<vmem>>, vector<2x32xf32>
    tpu.vector_store %arg9[%c10_74, %c0_75], %85 {strides = array<i32>} : memref<16x32xf32, #tpu.memory_space<vmem>>, vector<2x32xf32>,
    %c4_76 = arith.constant 4 : index
    %c0_77 = arith.constant 0 : index
    %92 = vector.load %arg10[%c4_76, %c0_77] : memref<16x32xf32, #tpu.memory_space<vmem>>, vector<2x32xf32>
    tpu.vector_store %arg10[%c4_76, %c0_77], %90 {strides = array<i32>} : memref<16x32xf32, #tpu.memory_space<vmem>>, vector<2x32xf32>,
    %c12_78 = arith.constant 12 : index
    %c0_79 = arith.constant 0 : index
    %93 = vector.load %arg11[%c12_78, %c0_79] : memref<16x32xf32, #tpu.memory_space<vmem>>, vector<2x32xf32>
    %94 = arith.truncf %85 : vector<2x32xf32> to vector<2x32xbf16>
    %cst_80 = arith.constant dense<0.000000e+00> : vector<2x32xf32>
    %95 = tpu.matmul %94, %19, %cst_80 {dimension_numbers = #tpu.dot_dimension_numbers<[1], [0], [0], [1], [0, 0, 1, 1], [], []>} : vector<2x32xbf16>, vector<32x32xbf16>, vector<2x32xf32> -> vector<2x32xf32>
    %96 = arith.addf %93, %95 : vector<2x32xf32>
    %97 = math.tanh %96 : vector<2x32xf32>
    %c2_81 = arith.constant 2 : index
    %c0_82 = arith.constant 0 : index
    %98 = vector.load %arg12[%c2_81, %c0_82] : memref<16x32xf32, #tpu.memory_space<vmem>>, vector<2x32xf32>
    %99 = arith.truncf %90 : vector<2x32xf32> to vector<2x32xbf16>
    %cst_83 = arith.constant dense<0.000000e+00> : vector<2x32xf32>
    %100 = tpu.matmul %99, %20, %cst_83 {dimension_numbers = #tpu.dot_dimension_numbers<[1], [0], [0], [1], [0, 0, 1, 1], [], []>} : vector<2x32xbf16>, vector<32x32xbf16>, vector<2x32xf32> -> vector<2x32xf32>
    %101 = arith.addf %98, %100 : vector<2x32xf32>
    %102 = math.tanh %101 : vector<2x32xf32>
    %c12_84 = arith.constant 12 : index
    %c0_85 = arith.constant 0 : index
    %103 = vector.load %arg9[%c12_84, %c0_85] : memref<16x32xf32, #tpu.memory_space<vmem>>, vector<2x32xf32>
    tpu.vector_store %arg9[%c12_84, %c0_85], %97 {strides = array<i32>} : memref<16x32xf32, #tpu.memory_space<vmem>>, vector<2x32xf32>,
    %c2_86 = arith.constant 2 : index
    %c0_87 = arith.constant 0 : index
    %104 = vector.load %arg10[%c2_86, %c0_87] : memref<16x32xf32, #tpu.memory_space<vmem>>, vector<2x32xf32>
    tpu.vector_store %arg10[%c2_86, %c0_87], %102 {strides = array<i32>} : memref<16x32xf32, #tpu.memory_space<vmem>>, vector<2x32xf32>,
    %c14_88 = arith.constant 14 : index
    %c0_89 = arith.constant 0 : index
    %105 = vector.load %arg11[%c14_88, %c0_89] : memref<16x32xf32, #tpu.memory_space<vmem>>, vector<2x32xf32>
    %106 = arith.truncf %97 : vector<2x32xf32> to vector<2x32xbf16>
    %cst_90 = arith.constant dense<0.000000e+00> : vector<2x32xf32>
    %107 = tpu.matmul %106, %19, %cst_90 {dimension_numbers = #tpu.dot_dimension_numbers<[1], [0], [0], [1], [0, 0, 1, 1], [], []>} : vector<2x32xbf16>, vector<32x32xbf16>, vector<2x32xf32> -> vector<2x32xf32>
    %108 = arith.addf %105, %107 : vector<2x32xf32>
    %109 = math.tanh %108 : vector<2x32xf32>
    %c0_91 = arith.constant 0 : index
    %c0_92 = arith.constant 0 : index
    %110 = vector.load %arg12[%c0_91, %c0_92] : memref<16x32xf32, #tpu.memory_space<vmem>>, vector<2x32xf32>
    %111 = arith.truncf %102 : vector<2x32xf32> to vector<2x32xbf16>
    %cst_93 = arith.constant dense<0.000000e+00> : vector<2x32xf32>
    %112 = tpu.matmul %111, %20, %cst_93 {dimension_numbers = #tpu.dot_dimension_numbers<[1], [0], [0], [1], [0, 0, 1, 1], [], []>} : vector<2x32xbf16>, vector<32x32xbf16>, vector<2x32xf32> -> vector<2x32xf32>
    %113 = arith.addf %110, %112 : vector<2x32xf32>
    %114 = math.tanh %113 : vector<2x32xf32>
    %c14_94 = arith.constant 14 : index
    %c0_95 = arith.constant 0 : index
    %115 = vector.load %arg9[%c14_94, %c0_95] : memref<16x32xf32, #tpu.memory_space<vmem>>, vector<2x32xf32>
    tpu.vector_store %arg9[%c14_94, %c0_95], %109 {strides = array<i32>} : memref<16x32xf32, #tpu.memory_space<vmem>>, vector<2x32xf32>,
    %c0_96 = arith.constant 0 : index
    %c0_97 = arith.constant 0 : index
    %116 = vector.load %arg10[%c0_96, %c0_97] : memref<16x32xf32, #tpu.memory_space<vmem>>, vector<2x32xf32>
    tpu.vector_store %arg10[%c0_96, %c0_97], %114 {strides = array<i32>} : memref<16x32xf32, #tpu.memory_space<vmem>>, vector<2x32xf32>,
    %c0_98 = arith.constant 0 : index
    %c0_99 = arith.constant 0 : index
    %117 = vector.load %arg13[%c0_98, %c0_99] : memref<2x32xf32, #tpu.memory_space<vmem>>, vector<2x32xf32>
    tpu.vector_store %arg13[%c0_98, %c0_99], %109 {strides = array<i32>} : memref<2x32xf32, #tpu.memory_space<vmem>>, vector<2x32xf32>,
    %c0_100 = arith.constant 0 : index
    %c0_101 = arith.constant 0 : index
    %118 = vector.load %arg14[%c0_100, %c0_101] : memref<2x32xf32, #tpu.memory_space<vmem>>, vector<2x32xf32>
    tpu.vector_store %arg14[%c0_100, %c0_101], %114 {strides = array<i32>} : memref<2x32xf32, #tpu.memory_space<vmem>>, vector<2x32xf32>,
    return
  }
  func.func @transform_0(%arg0: i32) -> (i32, i32) {
    %c0_i32 = arith.constant 0 : i32
    %c0_i32_0 = arith.constant 0 : i32
    return %arg0, %c0_i32 : i32, i32
  }
  func.func @transform_1(%arg0: i32) -> (i32, i32) {
    %c0_i32 = arith.constant 0 : i32
    %0 = arith.subi %c0_i32, %arg0 : i32
    %c0_i32_0 = arith.constant 0 : i32
    %c0_i32_1 = arith.constant 0 : i32
    return %0, %c0_i32_0 : i32, i32
  }
  func.func @transform_2(%arg0: i32) -> (i32, i32) {
    %c0_i32 = arith.constant 0 : i32
    %c0_i32_0 = arith.constant 0 : i32
    %c0_i32_1 = arith.constant 0 : i32
    return %c0_i32, %c0_i32_0 : i32, i32
  }
  func.func @transform_3(%arg0: i32) -> (i32, i32) {
    %c0_i32 = arith.constant 0 : i32
    %c0_i32_0 = arith.constant 0 : i32
    %c0_i32_1 = arith.constant 0 : i32
    return %c0_i32, %c0_i32_0 : i32, i32
  }
  func.func @transform_4(%arg0: i32) -> (i32, i32) {
    %c0_i32 = arith.constant 0 : i32
    %c0_i32_0 = arith.constant 0 : i32
    %c0_i32_1 = arith.constant 0 : i32
    return %c0_i32, %c0_i32_0 : i32, i32
  }
  func.func @transform_5(%arg0: i32) -> (i32, i32) {
    %c0_i32 = arith.constant 0 : i32
    %c0_i32_0 = arith.constant 0 : i32
    %c0_i32_1 = arith.constant 0 : i32
    return %c0_i32, %c0_i32_0 : i32, i32
  }
  func.func @transform_6(%arg0: i32) -> (i32, i32) {
    %c0_i32 = arith.constant 0 : i32
    %c0_i32_0 = arith.constant 0 : i32
    %c0_i32_1 = arith.constant 0 : i32
    return %c0_i32, %c0_i32_0 : i32, i32
  }
  func.func @transform_7(%arg0: i32) -> (i32, i32) {
    %c0_i32 = arith.constant 0 : i32
    %c0_i32_0 = arith.constant 0 : i32
    %c0_i32_1 = arith.constant 0 : i32
    return %c0_i32, %c0_i32_0 : i32, i32
  }
  func.func @transform_8(%arg0: i32) -> (i32, i32) {
    %c0_i32 = arith.constant 0 : i32
    %c0_i32_0 = arith.constant 0 : i32
    return %arg0, %c0_i32 : i32, i32
  }
  func.func @transform_9(%arg0: i32) -> (i32, i32) {
    %c0_i32 = arith.constant 0 : i32
    %0 = arith.subi %c0_i32, %arg0 : i32
    %c0_i32_0 = arith.constant 0 : i32
    %c0_i32_1 = arith.constant 0 : i32
    return %0, %c0_i32_0 : i32, i32
  }
}

</mosaic_0001>

<llo_original>
// kernel: bidirectional_rnn.1
$region0: #{bidirectional_rnn.1}
  #allocation0 [shape = 'u32[]', space=smem, size = 0x4, offset = 0x4, fixed_abs, tag = 'smem constant byte address 0x4 - core index']
  #allocation1 [shape = 'u32[144,128]{1,0:T(1,128)}', space=vmem, size = 0x12000, scoped, tag = 'internal scratch']
  #allocation2 [shape = 'f32[16,32]{1,0:T(8,128)}', space=vmem, size = 0x2000, scoped, tag = 'scratch operand']
  #allocation3 [shape = 'f32[16,32]{1,0:T(8,128)}', space=vmem, size = 0x2000, scoped, tag = 'scratch operand']
  #allocation4 [shape = 'f32[2,32]{1,0:T(2,128)}', space=vmem, size = 0x400, scoped, tag = 'scratch operand']
  #allocation5 [shape = 'f32[2,32]{1,0:T(2,128)}', space=vmem, size = 0x400, scoped, tag = 'scratch operand']
  %s0 = inlined_call_operand.vmem [shape: bf16[16,4], index: 0, kind: input, shape index: {}, may-alias: {0,1}]
  %s1 = inlined_call_operand.vmem [shape: bf16[16,4], index: 1, kind: input, shape index: {}, may-alias: {0,1}]
  %s2 = inlined_call_operand.vmem [shape: bf16[4,32], index: 2, kind: input, shape index: {}]
  %s3 = inlined_call_operand.vmem [shape: bf16[4,32], index: 3, kind: input, shape index: {}]
  %s4 = inlined_call_operand.vmem [shape: f32[1,32], index: 4, kind: input, shape index: {}]
  %s5 = inlined_call_operand.vmem [shape: f32[1,32], index: 5, kind: input, shape index: {}]
  %s6 = inlined_call_operand.vmem [shape: bf16[32,32], index: 6, kind: input, shape index: {}]
  %s7 = inlined_call_operand.vmem [shape: bf16[32,32], index: 7, kind: input, shape index: {}]
  %s8 = inlined_call_operand.vmem [shape: f32[16,32], index: 8, kind: output, shape index: {0}]
  %s9 = inlined_call_operand.vmem [shape: f32[16,32], index: 9, kind: output, shape index: {1}]
  %10 = xla_tuple %s8, %s9
  %s11 = sld [smem:[#allocation0]]
  $region54: #{bidirectional_rnn.1} parent=0
    _
  %s13 = ssub.s32 1, %s11
  %s14 = scalar_select 0, %s13, %s11
  // Predicated region
  $region2: #{bidirectional_rnn.1} parent=0 // pred_check
    _
  $region3: #{bidirectional_rnn.1} parent=0 // pred_check_branch
    %16 = sbr.rel (0) target = $region5
  $region4: #{bidirectional_rnn.1} parent=0 // pred_region
    _
  $region5: #{bidirectional_rnn.1} parent=0 // pred_fallthru
    _
  // Predicated region
  $region6: #{bidirectional_rnn.1} parent=0 // pred_check
    _
  $region7: #{bidirectional_rnn.1} parent=0 // pred_check_branch
    %18 = sbr.rel (0) target = $region9
  $region8: #{bidirectional_rnn.1} parent=0 // pred_region
    %s19 = ssub.s32 0, 0
    %s20 = smul.u32 2, %s19
    %p21 = scmp.lt.s32.totalorder %s20, 1
    %s22 = scalar_select %p21, %s20, 1
    %s23 = smul.addr %s22, 4
    %s24 = scalar_lea.vmem %s1, %s23
    %s25 = ssub.s32 0, 0
    %s26 = smul.u32 2, %s25
  $region9: #{bidirectional_rnn.1} parent=0 // pred_fallthru
    _
  // Predicated region
  $region10: #{bidirectional_rnn.1} parent=0 // pred_check
    _
  $region11: #{bidirectional_rnn.1} parent=0 // pred_check_branch
    %28 = sbr.rel (0) target = $region13
  $region12: #{bidirectional_rnn.1} parent=0 // pred_region
    _
  $region13: #{bidirectional_rnn.1} parent=0 // pred_fallthru
    _
  // Predicated region
  $region14: #{bidirectional_rnn.1} parent=0 // pred_check
    _
  $region15: #{bidirectional_rnn.1} parent=0 // pred_check_branch
    %30 = sbr.rel (0) target = $region17
  $region16: #{bidirectional_rnn.1} parent=0 // pred_region
    _
  $region17: #{bidirectional_rnn.1} parent=0 // pred_fallthru
    _
  // Predicated region
  $region18: #{bidirectional_rnn.1} parent=0 // pred_check
    _
  $region19: #{bidirectional_rnn.1} parent=0 // pred_check_branch
    %32 = sbr.rel (0) target = $region21
  $region20: #{bidirectional_rnn.1} parent=0 // pred_region
    _
  $region21: #{bidirectional_rnn.1} parent=0 // pred_fallthru
    _
  // Predicated region
  $region22: #{bidirectional_rnn.1} parent=0 // pred_check
    _
  $region23: #{bidirectional_rnn.1} parent=0 // pred_check_branch
    %34 = sbr.rel (0) target = $region25
  $region24: #{bidirectional_rnn.1} parent=0 // pred_region
    _
  $region25: #{bidirectional_rnn.1} parent=0 // pred_fallthru
    _
  // Predicated region
  $region26: #{bidirectional_rnn.1} parent=0 // pred_check
    _
  $region27: #{bidirectional_rnn.1} parent=0 // pred_check_branch
    %36 = sbr.rel (0) target = $region29
  $region28: #{bidirectional_rnn.1} parent=0 // pred_region
    _
  $region29: #{bidirectional_rnn.1} parent=0 // pred_fallthru
    _
  // Predicated region
  $region30: #{bidirectional_rnn.1} parent=0 // pred_check
    _
  $region31: #{bidirectional_rnn.1} parent=0 // pred_check_branch
    %38 = sbr.rel (0) target = $region33
  $region32: #{bidirectional_rnn.1} parent=0 // pred_region
    _
  $region33: #{bidirectional_rnn.1} parent=0 // pred_fallthru
    _
  %s39 = ssub.s32 0, 0
  %s40 = smul.u32 2, %s39
  %p41 = scmp.lt.s32.totalorder %s40, 1
  %s42 = scalar_select %p41, %s40, 1
  %s43 = smul.addr %s42, 4
  %s44 = scalar_lea.vmem %s1, %s43
  %s45 = ssub.s32 0, 0
  %s46 = smul.u32 2, %s45
  %p47 = scmp.lt.s32.totalorder %s46, 1
  %s48 = scalar_select %p47, %s46, 1
  %s49 = smul.addr %s48, 8
  %s50 = scalar_lea.vmem %s9, %s49
  %s51 = ssub.s32 0, 0
  %s52 = smul.u32 2, %s51
  %p53 = scmp.lt.s32.totalorder %s52, 1
  %s54 = scalar_select %p53, %s52, 1
  %s55 = smul.addr %s54, 4
  %s56 = scalar_lea.vmem %s1, %s55
  %s57 = ssub.s32 0, 0
  %s58 = smul.u32 2, %s57
  %s59 = ssub.s32 0, 0
  %s60 = smul.u32 2, %s59
  %p61 = scmp.lt.s32.totalorder %s60, 1
  %s62 = scalar_select %p61, %s60, 1
  %s63 = smul.addr %s62, 8
  %s64 = scalar_lea.vmem %s9, %s63
  %s65 = ssub.s32 0, 0
  %s66 = smul.u32 2, %s65
  %p68 = scmp.eq.s32.totalorder 0, 0
  // Predicated region
  $region34: #{bidirectional_rnn.1} parent=0 // pred_check
    %p69 = pneg %p68
  $region35: #{bidirectional_rnn.1} parent=0 // pred_check_branch
    %71 = sbr.rel (%p69) target = $region37
  $region36: #{bidirectional_rnn.1} parent=0 // pred_region
    %vm72 = vcmask 254976
    %73 = vst.msk [vmem:[#allocation4] sm:$0x3] %vm72, 0.0
    %74 = vst.msk [vmem:[#allocation5] sm:$0x3] %vm72, 0.0
  $region37: #{bidirectional_rnn.1} parent=0 // pred_fallthru
    _
  %v75 = vld [vmem:[%s0] sm:$0xf]
  %v76 = vld [vmem:[%s0 + $0x4] sm:$0xf]
  %v77 = vld [vmem:[%s2] sm:$0x3]
  %v78 = vld [vmem:[%s4] sm:$0x1]
  %v80 = vlaneseq
  %v81 = vshrl.u32 %v80, 7
  %v82 = vsub.s32 0, %v81
  %v83 = vrot.slane %v78, %v82
  %v87 = vunpack.c.l.b16 %v75
  %v88 = vunpack.c.l.b16 %v76
  %v89 = vpack.c.b16 %v88, %v87
  %vm90 = vcmask 31744
  %v92 = vsel %vm90, %v89, 0
  %vm94 = vcmask 1041408
  %v96 = vsel %vm94, %v77, 0
  %98 = vmatprep.subr.bf16.mxu0 0
  %99 = vmatpush1.bf16.msra.mxu0 0
  %100 = vmatprep.subr.bf16.mxu0 0
  %101 = vmatpush1.bf16.msra.mxu0 0
  %102 = vmatprep.subr.bf16.mxu0 0
  %103 = vmatpush1.bf16.msra.mxu0 0
  %104 = vmatprep.subr.bf16.mxu0 0
  %105 = vmatpush1.bf16.msra.mxu0 0
  %106 = vmatprep.subr.bf16.mxu0 0
  %107 = vmatpush1.bf16.msra.mxu0 0
  %108 = vmatprep.subr.bf16.mxu0 0
  %109 = vmatpush1.bf16.msra.mxu0 0
  %110 = vmatprep.subr.bf16.mxu0 0
  %111 = vmatpush1.bf16.msra.mxu0 0
  %112 = vmatprep.subr.bf16.mxu0 0
  %113 = vmatpush1.bf16.msra.mxu0 %v96
  %114 = vmatprep.subr.bf16.mxu0 0
  %115 = vmatpush2.bf16.msra.mxu0 0
  %116 = vmatprep.subr.bf16.mxu0 0
  %117 = vmatpush2.bf16.msra.mxu0 0
  %118 = vmatprep.subr.bf16.mxu0 0
  %119 = vmatpush2.bf16.msra.mxu0 0
  %120 = vmatprep.subr.bf16.mxu0 0
  %121 = vmatpush2.bf16.msra.mxu0 0
  %122 = vmatprep.subr.bf16.mxu0 0
  %123 = vmatpush2.bf16.msra.mxu0 0
  %124 = vmatprep.subr.bf16.mxu0 0
  %125 = vmatpush2.bf16.msra.mxu0 0
  %126 = vmatprep.subr.bf16.mxu0 0
  %127 = vmatpush2.bf16.msra.mxu0 0
  %128 = vmatprep.subr.bf16.mxu0 0
  %129 = vmatpush2.bf16.msra.mxu0 0
  %130 = vmatprep.mubr.bf16.mxu0 0
  %131 = vmatmul.mubr.bf16.gmra.mxu0 %v92
  %v132 = vpop.f32.mrf.mxu0
  %v133 = vadd.f32 %v83, %v132
  %v134 = vpop.f32.mrf.mxu0
  %v135 = vpop.f32.mrf.mxu0
  %v136 = vadd.f32 %v83, %v135
  %v137 = vpop.f32.mrf.mxu0
  %138 = vdwg.mxu0
  %vm139 = vcmask 261120
  %140 = vst.msk [vmem:[#allocation2] sm:$0xff] %vm139, %v133
  %141 = vst.msk [vmem:[#allocation2 + $0x8] sm:$0xff] %vm139, %v136
  %v142 = vld [vmem:[%s56] sm:$0xf]
  %v143 = vld [vmem:[%s56 + $0x4] sm:$0xf]
  %v144 = vld [vmem:[%s3] sm:$0x3]
  %v145 = vld [vmem:[%s5] sm:$0x1]
  %v147 = vlaneseq
  %v148 = vshrl.u32 %v147, 7
  %v149 = vsub.s32 0, %v148
  %v150 = vrot.slane %v145, %v149
  %v154 = vunpack.c.l.b16 %v142
  %v155 = vunpack.c.l.b16 %v143
  %v156 = vpack.c.b16 %v155, %v154
  %v158 = vsel %vm90, %v156, 0
  %v161 = vsel %vm94, %v144, 0
  %163 = vmatprep.subr.bf16.mxu0 0
  %164 = vmatpush1.bf16.msra.mxu0 0
  %165 = vmatprep.subr.bf16.mxu0 0
  %166 = vmatpush1.bf16.msra.mxu0 0
  %167 = vmatprep.subr.bf16.mxu0 0
  %168 = vmatpush1.bf16.msra.mxu0 0
  %169 = vmatprep.subr.bf16.mxu0 0
  %170 = vmatpush1.bf16.msra.mxu0 0
  %171 = vmatprep.subr.bf16.mxu0 0
  %172 = vmatpush1.bf16.msra.mxu0 0
  %173 = vmatprep.subr.bf16.mxu0 0
  %174 = vmatpush1.bf16.msra.mxu0 0
  %175 = vmatprep.subr.bf16.mxu0 0
  %176 = vmatpush1.bf16.msra.mxu0 0
  %177 = vmatprep.subr.bf16.mxu0 0
  %178 = vmatpush1.bf16.msra.mxu0 %v161
  %179 = vmatprep.subr.bf16.mxu0 0
  %180 = vmatpush2.bf16.msra.mxu0 0
  %181 = vmatprep.subr.bf16.mxu0 0
  %182 = vmatpush2.bf16.msra.mxu0 0
  %183 = vmatprep.subr.bf16.mxu0 0
  %184 = vmatpush2.bf16.msra.mxu0 0
  %185 = vmatprep.subr.bf16.mxu0 0
  %186 = vmatpush2.bf16.msra.mxu0 0
  %187 = vmatprep.subr.bf16.mxu0 0
  %188 = vmatpush2.bf16.msra.mxu0 0
  %189 = vmatprep.subr.bf16.mxu0 0
  %190 = vmatpush2.bf16.msra.mxu0 0
  %191 = vmatprep.subr.bf16.mxu0 0
  %192 = vmatpush2.bf16.msra.mxu0 0
  %193 = vmatprep.subr.bf16.mxu0 0
  %194 = vmatpush2.bf16.msra.mxu0 0
  %195 = vmatprep.mubr.bf16.mxu0 0
  %196 = vmatmul.mubr.bf16.gmra.mxu0 %v158
  %v197 = vpop.f32.mrf.mxu0
  %v198 = vadd.f32 %v150, %v197
  %v199 = vpop.f32.mrf.mxu0
  %v200 = vpop.f32.mrf.mxu0
  %v201 = vadd.f32 %v150, %v200
  %v202 = vpop.f32.mrf.mxu0
  %203 = vdwg.mxu0
  %204 = vst.msk [vmem:[#allocation3] sm:$0xff] %vm139, %v198
  %205 = vst.msk [vmem:[#allocation3 + $0x8] sm:$0xff] %vm139, %v201
  %v206 = vld [vmem:[#allocation4] sm:$0x3]
  %v207 = vld [vmem:[#allocation5] sm:$0x3]
  %v208 = vld [vmem:[%s6] sm:$0xf]
  %v209 = vld [vmem:[%s6 + $0x4] sm:$0xf]
  %v210 = vld [vmem:[%s6 + $0x8] sm:$0xf]
  %v211 = vld [vmem:[%s6 + $0xc] sm:$0xf]
  %v212 = vld [vmem:[%s7] sm:$0xf]
  %v213 = vld [vmem:[%s7 + $0x4] sm:$0xf]
  %v214 = vld [vmem:[%s7 + $0x8] sm:$0xf]
  %v215 = vld [vmem:[%s7 + $0xc] sm:$0xf]
  %v216 = vld [vmem:[#allocation2] sm:$0x3]
  %v217 = vpack.c.bf16 %v206, %v206
  %v222 = vunpack.c.l.b16 %v208
  %v223 = vunpack.c.l.b16 %v209
  %v224 = vunpack.c.l.b16 %v210
  %v225 = vunpack.c.l.b16 %v211
  %v226 = vpack.c.b16 %v223, %v222
  %v227 = vpack.c.b16 %v225, %v224
  %v231 = vsel %vm139, %v217, 0
  %233 = vmatprep.subr.bf16.mxu0 0
  %234 = vmatpush1.bf16.msra.mxu0 0
  %235 = vmatprep.subr.bf16.mxu0 0
  %236 = vmatpush1.bf16.msra.mxu0 0
  %237 = vmatprep.subr.bf16.mxu0 0
  %238 = vmatpush1.bf16.msra.mxu0 0
  %239 = vmatprep.subr.bf16.mxu0 0
  %240 = vmatpush1.bf16.msra.mxu0 0
  %241 = vmatprep.subr.bf16.mxu0 0
  %242 = vmatpush1.bf16.msra.mxu0 0
  %243 = vmatprep.subr.bf16.mxu0 0
  %244 = vmatpush1.bf16.msra.mxu0 0
  %245 = vmatprep.subr.bf16.mxu0 0
  %246 = vmatpush1.bf16.msra.mxu0 %v227
  %247 = vmatprep.subr.bf16.mxu0 0
  %248 = vmatpush1.bf16.msra.mxu0 %v226
  %249 = vmatprep.subr.bf16.mxu0 0
  %250 = vmatpush2.bf16.msra.mxu0 0
  %251 = vmatprep.subr.bf16.mxu0 0
  %252 = vmatpush2.bf16.msra.mxu0 0
  %253 = vmatprep.subr.bf16.mxu0 0
  %254 = vmatpush2.bf16.msra.mxu0 0
  %255 = vmatprep.subr.bf16.mxu0 0
  %256 = vmatpush2.bf16.msra.mxu0 0
  %257 = vmatprep.subr.bf16.mxu0 0
  %258 = vmatpush2.bf16.msra.mxu0 0
  %259 = vmatprep.subr.bf16.mxu0 0
  %260 = vmatpush2.bf16.msra.mxu0 0
  %261 = vmatprep.subr.bf16.mxu0 0
  %262 = vmatpush2.bf16.msra.mxu0 0
  %263 = vmatprep.subr.bf16.mxu0 0
  %264 = vmatpush2.bf16.msra.mxu0 0
  %265 = vmatprep.mubr.bf16.mxu0 0
  %266 = vmatmul.mubr.bf16.gmra.mxu0 %v231
  %v267 = vpop.f32.mrf.mxu0
  %v268 = vadd.f32 0.0, %v267
  %v269 = vpop.f32.mrf.mxu0
  %v270 = vpop.f32.mrf.mxu0
  %v271 = vpop.f32.mrf.mxu0
  %272 = vdwg.mxu0
  %v273 = vadd.f32 %v216, %v268
  %v274 = vtanh.pop %v273
  %v275 = vld [vmem:[#allocation3 + $0xe] sm:$0x3]
  %v276 = vpack.c.bf16 %v207, %v207
  %v281 = vunpack.c.l.b16 %v212
  %v282 = vunpack.c.l.b16 %v213
  %v283 = vunpack.c.l.b16 %v214
  %v284 = vunpack.c.l.b16 %v215
  %v285 = vpack.c.b16 %v282, %v281
  %v286 = vpack.c.b16 %v284, %v283
  %v290 = vsel %vm139, %v276, 0
  %292 = vmatprep.subr.bf16.mxu0 0
  %293 = vmatpush1.bf16.msra.mxu0 0
  %294 = vmatprep.subr.bf16.mxu0 0
  %295 = vmatpush1.bf16.msra.mxu0 0
  %296 = vmatprep.subr.bf16.mxu0 0
  %297 = vmatpush1.bf16.msra.mxu0 0
  %298 = vmatprep.subr.bf16.mxu0 0
  %299 = vmatpush1.bf16.msra.mxu0 0
  %300 = vmatprep.subr.bf16.mxu0 0
  %301 = vmatpush1.bf16.msra.mxu0 0
  %302 = vmatprep.subr.bf16.mxu0 0
  %303 = vmatpush1.bf16.msra.mxu0 0
  %304 = vmatprep.subr.bf16.mxu0 0
  %305 = vmatpush1.bf16.msra.mxu0 %v286
  %306 = vmatprep.subr.bf16.mxu0 0
  %307 = vmatpush1.bf16.msra.mxu0 %v285
  %308 = vmatprep.subr.bf16.mxu0 0
  %309 = vmatpush2.bf16.msra.mxu0 0
  %310 = vmatprep.subr.bf16.mxu0 0
  %311 = vmatpush2.bf16.msra.mxu0 0
  %312 = vmatprep.subr.bf16.mxu0 0
  %313 = vmatpush2.bf16.msra.mxu0 0
  %314 = vmatprep.subr.bf16.mxu0 0
  %315 = vmatpush2.bf16.msra.mxu0 0
  %316 = vmatprep.subr.bf16.mxu0 0
  %317 = vmatpush2.bf16.msra.mxu0 0
  %318 = vmatprep.subr.bf16.mxu0 0
  %319 = vmatpush2.bf16.msra.mxu0 0
  %320 = vmatprep.subr.bf16.mxu0 0
  %321 = vmatpush2.bf16.msra.mxu0 0
  %322 = vmatprep.subr.bf16.mxu0 0
  %323 = vmatpush2.bf16.msra.mxu0 0
  %324 = vmatprep.mubr.bf16.mxu0 0
  %325 = vmatmul.mubr.bf16.gmra.mxu0 %v290
  %v326 = vpop.f32.mrf.mxu0
  %v327 = vadd.f32 0.0, %v326
  %v328 = vpop.f32.mrf.mxu0
  %v329 = vpop.f32.mrf.mxu0
  %v330 = vpop.f32.mrf.mxu0
  %331 = vdwg.mxu0
  %v332 = vadd.f32 %v275, %v327
  %v333 = vtanh.pop %v332
  %vm334 = vcmask 254976
  %335 = vst.msk [vmem:[%s8] sm:$0x3] %vm334, %v274
  %336 = vst.msk [vmem:[%s64 + $0xe] sm:$0x3] %vm334, %v333
  %v337 = vld [vmem:[#allocation2 + $0x2] sm:$0x3]
  %v338 = vpack.c.bf16 %v274, %v274
  %v340 = vsel %vm139, %v338, 0
  %342 = vmatprep.subr.bf16.mxu0 0
  %343 = vmatpush1.bf16.msra.mxu0 0
  %344 = vmatprep.subr.bf16.mxu0 0
  %345 = vmatpush1.bf16.msra.mxu0 0
  %346 = vmatprep.subr.bf16.mxu0 0
  %347 = vmatpush1.bf16.msra.mxu0 0
  %348 = vmatprep.subr.bf16.mxu0 0
  %349 = vmatpush1.bf16.msra.mxu0 0
  %350 = vmatprep.subr.bf16.mxu0 0
  %351 = vmatpush1.bf16.msra.mxu0 0
  %352 = vmatprep.subr.bf16.mxu0 0
  %353 = vmatpush1.bf16.msra.mxu0 0
  %354 = vmatprep.subr.bf16.mxu0 0
  %355 = vmatpush1.bf16.msra.mxu0 %v227
  %356 = vmatprep.subr.bf16.mxu0 0
  %357 = vmatpush1.bf16.msra.mxu0 %v226
  %358 = vmatprep.subr.bf16.mxu0 0
  %359 = vmatpush2.bf16.msra.mxu0 0
  %360 = vmatprep.subr.bf16.mxu0 0
  %361 = vmatpush2.bf16.msra.mxu0 0
  %362 = vmatprep.subr.bf16.mxu0 0
  %363 = vmatpush2.bf16.msra.mxu0 0
  %364 = vmatprep.subr.bf16.mxu0 0
  %365 = vmatpush2.bf16.msra.mxu0 0
  %366 = vmatprep.subr.bf16.mxu0 0
  %367 = vmatpush2.bf16.msra.mxu0 0
  %368 = vmatprep.subr.bf16.mxu0 0
  %369 = vmatpush2.bf16.msra.mxu0 0
  %370 = vmatprep.subr.bf16.mxu0 0
  %371 = vmatpush2.bf16.msra.mxu0 0
  %372 = vmatprep.subr.bf16.mxu0 0
  %373 = vmatpush2.bf16.msra.mxu0 0
  %374 = vmatprep.mubr.bf16.mxu0 0
  %375 = vmatmul.mubr.bf16.gmra.mxu0 %v340
  %v376 = vpop.f32.mrf.mxu0
  %v377 = vadd.f32 0.0, %v376
  %v378 = vpop.f32.mrf.mxu0
  %v379 = vpop.f32.mrf.mxu0
  %v380 = vpop.f32.mrf.mxu0
  %381 = vdwg.mxu0
  %v382 = vadd.f32 %v337, %v377
  %v383 = vtanh.pop %v382
  %v384 = vld [vmem:[#allocation3 + $0xc] sm:$0x3]
  %v385 = vpack.c.bf16 %v333, %v333
  %v387 = vsel %vm139, %v385, 0
  %389 = vmatprep.subr.bf16.mxu0 0
  %390 = vmatpush1.bf16.msra.mxu0 0
  %391 = vmatprep.subr.bf16.mxu0 0
  %392 = vmatpush1.bf16.msra.mxu0 0
  %393 = vmatprep.subr.bf16.mxu0 0
  %394 = vmatpush1.bf16.msra.mxu0 0
  %395 = vmatprep.subr.bf16.mxu0 0
  %396 = vmatpush1.bf16.msra.mxu0 0
  %397 = vmatprep.subr.bf16.mxu0 0
  %398 = vmatpush1.bf16.msra.mxu0 0
  %399 = vmatprep.subr.bf16.mxu0 0
  %400 = vmatpush1.bf16.msra.mxu0 0
  %401 = vmatprep.subr.bf16.mxu0 0
  %402 = vmatpush1.bf16.msra.mxu0 %v286
  %403 = vmatprep.subr.bf16.mxu0 0
  %404 = vmatpush1.bf16.msra.mxu0 %v285
  %405 = vmatprep.subr.bf16.mxu0 0
  %406 = vmatpush2.bf16.msra.mxu0 0
  %407 = vmatprep.subr.bf16.mxu0 0
  %408 = vmatpush2.bf16.msra.mxu0 0
  %409 = vmatprep.subr.bf16.mxu0 0
  %410 = vmatpush2.bf16.msra.mxu0 0
  %411 = vmatprep.subr.bf16.mxu0 0
  %412 = vmatpush2.bf16.msra.mxu0 0
  %413 = vmatprep.subr.bf16.mxu0 0
  %414 = vmatpush2.bf16.msra.mxu0 0
  %415 = vmatprep.subr.bf16.mxu0 0
  %416 = vmatpush2.bf16.msra.mxu0 0
  %417 = vmatprep.subr.bf16.mxu0 0
  %418 = vmatpush2.bf16.msra.mxu0 0
  %419 = vmatprep.subr.bf16.mxu0 0
  %420 = vmatpush2.bf16.msra.mxu0 0
  %421 = vmatprep.mubr.bf16.mxu0 0
  %422 = vmatmul.mubr.bf16.gmra.mxu0 %v387
  %v423 = vpop.f32.mrf.mxu0
  %v424 = vadd.f32 0.0, %v423
  %v425 = vpop.f32.mrf.mxu0
  %v426 = vpop.f32.mrf.mxu0
  %v427 = vpop.f32.mrf.mxu0
  %428 = vdwg.mxu0
  %v429 = vadd.f32 %v384, %v424
  %v430 = vtanh.pop %v429
  %431 = vst.msk [vmem:[%s8 + $0x2] sm:$0x3] %vm334, %v383
  %432 = vst.msk [vmem:[%s64 + $0xc] sm:$0x3] %vm334, %v430
  %v433 = vld [vmem:[#allocation2 + $0x4] sm:$0x3]
  %v434 = vpack.c.bf16 %v383, %v383
  %v436 = vsel %vm139, %v434, 0
  %438 = vmatprep.subr.bf16.mxu0 0
  %439 = vmatpush1.bf16.msra.mxu0 0
  %440 = vmatprep.subr.bf16.mxu0 0
  %441 = vmatpush1.bf16.msra.mxu0 0
  %442 = vmatprep.subr.bf16.mxu0 0
  %443 = vmatpush1.bf16.msra.mxu0 0
  %444 = vmatprep.subr.bf16.mxu0 0
  %445 = vmatpush1.bf16.msra.mxu0 0
  %446 = vmatprep.subr.bf16.mxu0 0
  %447 = vmatpush1.bf16.msra.mxu0 0
  %448 = vmatprep.subr.bf16.mxu0 0
  %449 = vmatpush1.bf16.msra.mxu0 0
  %450 = vmatprep.subr.bf16.mxu0 0
  %451 = vmatpush1.bf16.msra.mxu0 %v227
  %452 = vmatprep.subr.bf16.mxu0 0
  %453 = vmatpush1.bf16.msra.mxu0 %v226
  %454 = vmatprep.subr.bf16.mxu0 0
  %455 = vmatpush2.bf16.msra.mxu0 0
  %456 = vmatprep.subr.bf16.mxu0 0
  %457 = vmatpush2.bf16.msra.mxu0 0
  %458 = vmatprep.subr.bf16.mxu0 0
  %459 = vmatpush2.bf16.msra.mxu0 0
  %460 = vmatprep.subr.bf16.mxu0 0
  %461 = vmatpush2.bf16.msra.mxu0 0
  %462 = vmatprep.subr.bf16.mxu0 0
  %463 = vmatpush2.bf16.msra.mxu0 0
  %464 = vmatprep.subr.bf16.mxu0 0
  %465 = vmatpush2.bf16.msra.mxu0 0
  %466 = vmatprep.subr.bf16.mxu0 0
  %467 = vmatpush2.bf16.msra.mxu0 0
  %468 = vmatprep.subr.bf16.mxu0 0
  %469 = vmatpush2.bf16.msra.mxu0 0
  %470 = vmatprep.mubr.bf16.mxu0 0
  %471 = vmatmul.mubr.bf16.gmra.mxu0 %v436
  %v472 = vpop.f32.mrf.mxu0
  %v473 = vadd.f32 0.0, %v472
  %v474 = vpop.f32.mrf.mxu0
  %v475 = vpop.f32.mrf.mxu0
  %v476 = vpop.f32.mrf.mxu0
  %477 = vdwg.mxu0
  %v478 = vadd.f32 %v433, %v473
  %v479 = vtanh.pop %v478
  %v480 = vld [vmem:[#allocation3 + $0xa] sm:$0x3]
  %v481 = vpack.c.bf16 %v430, %v430
  %v483 = vsel %vm139, %v481, 0
  %485 = vmatprep.subr.bf16.mxu0 0
  %486 = vmatpush1.bf16.msra.mxu0 0
  %487 = vmatprep.subr.bf16.mxu0 0
  %488 = vmatpush1.bf16.msra.mxu0 0
  %489 = vmatprep.subr.bf16.mxu0 0
  %490 = vmatpush1.bf16.msra.mxu0 0
  %491 = vmatprep.subr.bf16.mxu0 0
  %492 = vmatpush1.bf16.msra.mxu0 0
  %493 = vmatprep.subr.bf16.mxu0 0
  %494 = vmatpush1.bf16.msra.mxu0 0
  %495 = vmatprep.subr.bf16.mxu0 0
  %496 = vmatpush1.bf16.msra.mxu0 0
  %497 = vmatprep.subr.bf16.mxu0 0
  %498 = vmatpush1.bf16.msra.mxu0 %v286
  %499 = vmatprep.subr.bf16.mxu0 0
  %500 = vmatpush1.bf16.msra.mxu0 %v285
  %501 = vmatprep.subr.bf16.mxu0 0
  %502 = vmatpush2.bf16.msra.mxu0 0
  %503 = vmatprep.subr.bf16.mxu0 0
  %504 = vmatpush2.bf16.msra.mxu0 0
  %505 = vmatprep.subr.bf16.mxu0 0
  %506 = vmatpush2.bf16.msra.mxu0 0
  %507 = vmatprep.subr.bf16.mxu0 0
  %508 = vmatpush2.bf16.msra.mxu0 0
  %509 = vmatprep.subr.bf16.mxu0 0
  %510 = vmatpush2.bf16.msra.mxu0 0
  %511 = vmatprep.subr.bf16.mxu0 0
  %512 = vmatpush2.bf16.msra.mxu0 0
  %513 = vmatprep.subr.bf16.mxu0 0
  %514 = vmatpush2.bf16.msra.mxu0 0
  %515 = vmatprep.subr.bf16.mxu0 0
  %516 = vmatpush2.bf16.msra.mxu0 0
  %517 = vmatprep.mubr.bf16.mxu0 0
  %518 = vmatmul.mubr.bf16.gmra.mxu0 %v483
  %v519 = vpop.f32.mrf.mxu0
  %v520 = vadd.f32 0.0, %v519
  %v521 = vpop.f32.mrf.mxu0
  %v522 = vpop.f32.mrf.mxu0
  %v523 = vpop.f32.mrf.mxu0
  %524 = vdwg.mxu0
  %v525 = vadd.f32 %v480, %v520
  %v526 = vtanh.pop %v525
  %527 = vst.msk [vmem:[%s8 + $0x4] sm:$0x3] %vm334, %v479
  %528 = vst.msk [vmem:[%s64 + $0xa] sm:$0x3] %vm334, %v526
  %v529 = vld [vmem:[#allocation2 + $0x6] sm:$0x3]
  %v530 = vpack.c.bf16 %v479, %v479
  %v532 = vsel %vm139, %v530, 0
  %534 = vmatprep.subr.bf16.mxu0 0
  %535 = vmatpush1.bf16.msra.mxu0 0
  %536 = vmatprep.subr.bf16.mxu0 0
  %537 = vmatpush1.bf16.msra.mxu0 0
  %538 = vmatprep.subr.bf16.mxu0 0
  %539 = vmatpush1.bf16.msra.mxu0 0
  %540 = vmatprep.subr.bf16.mxu0 0
  %541 = vmatpush1.bf16.msra.mxu0 0
  %542 = vmatprep.subr.bf16.mxu0 0
  %543 = vmatpush1.bf16.msra.mxu0 0
  %544 = vmatprep.subr.bf16.mxu0 0
  %545 = vmatpush1.bf16.msra.mxu0 0
  %546 = vmatprep.subr.bf16.mxu0 0
  %547 = vmatpush1.bf16.msra.mxu0 %v227
  %548 = vmatprep.subr.bf16.mxu0 0
  %549 = vmatpush1.bf16.msra.mxu0 %v226
  %550 = vmatprep.subr.bf16.mxu0 0
  %551 = vmatpush2.bf16.msra.mxu0 0
  %552 = vmatprep.subr.bf16.mxu0 0
  %553 = vmatpush2.bf16.msra.mxu0 0
  %554 = vmatprep.subr.bf16.mxu0 0
  %555 = vmatpush2.bf16.msra.mxu0 0
  %556 = vmatprep.subr.bf16.mxu0 0
  %557 = vmatpush2.bf16.msra.mxu0 0
  %558 = vmatprep.subr.bf16.mxu0 0
  %559 = vmatpush2.bf16.msra.mxu0 0
  %560 = vmatprep.subr.bf16.mxu0 0
  %561 = vmatpush2.bf16.msra.mxu0 0
  %562 = vmatprep.subr.bf16.mxu0 0
  %563 = vmatpush2.bf16.msra.mxu0 0
  %564 = vmatprep.subr.bf16.mxu0 0
  %565 = vmatpush2.bf16.msra.mxu0 0
  %566 = vmatprep.mubr.bf16.mxu0 0
  %567 = vmatmul.mubr.bf16.gmra.mxu0 %v532
  %v568 = vpop.f32.mrf.mxu0
  %v569 = vadd.f32 0.0, %v568
  %v570 = vpop.f32.mrf.mxu0
  %v571 = vpop.f32.mrf.mxu0
  %v572 = vpop.f32.mrf.mxu0
  %573 = vdwg.mxu0
  %v574 = vadd.f32 %v529, %v569
  %v575 = vtanh.pop %v574
  %v576 = vld [vmem:[#allocation3 + $0x8] sm:$0x3]
  %v577 = vpack.c.bf16 %v526, %v526
  %v579 = vsel %vm139, %v577, 0
  %581 = vmatprep.subr.bf16.mxu0 0
  %582 = vmatpush1.bf16.msra.mxu0 0
  %583 = vmatprep.subr.bf16.mxu0 0
  %584 = vmatpush1.bf16.msra.mxu0 0
  %585 = vmatprep.subr.bf16.mxu0 0
  %586 = vmatpush1.bf16.msra.mxu0 0
  %587 = vmatprep.subr.bf16.mxu0 0
  %588 = vmatpush1.bf16.msra.mxu0 0
  %589 = vmatprep.subr.bf16.mxu0 0
  %590 = vmatpush1.bf16.msra.mxu0 0
  %591 = vmatprep.subr.bf16.mxu0 0
  %592 = vmatpush1.bf16.msra.mxu0 0
  %593 = vmatprep.subr.bf16.mxu0 0
  %594 = vmatpush1.bf16.msra.mxu0 %v286
  %595 = vmatprep.subr.bf16.mxu0 0
  %596 = vmatpush1.bf16.msra.mxu0 %v285
  %597 = vmatprep.subr.bf16.mxu0 0
  %598 = vmatpush2.bf16.msra.mxu0 0
  %599 = vmatprep.subr.bf16.mxu0 0
  %600 = vmatpush2.bf16.msra.mxu0 0
  %601 = vmatprep.subr.bf16.mxu0 0
  %602 = vmatpush2.bf16.msra.mxu0 0
  %603 = vmatprep.subr.bf16.mxu0 0
  %604 = vmatpush2.bf16.msra.mxu0 0
  %605 = vmatprep.subr.bf16.mxu0 0
  %606 = vmatpush2.bf16.msra.mxu0 0
  %607 = vmatprep.subr.bf16.mxu0 0
  %608 = vmatpush2.bf16.msra.mxu0 0
  %609 = vmatprep.subr.bf16.mxu0 0
  %610 = vmatpush2.bf16.msra.mxu0 0
  %611 = vmatprep.subr.bf16.mxu0 0
  %612 = vmatpush2.bf16.msra.mxu0 0
  %613 = vmatprep.mubr.bf16.mxu0 0
  %614 = vmatmul.mubr.bf16.gmra.mxu0 %v579
  %v615 = vpop.f32.mrf.mxu0
  %v616 = vadd.f32 0.0, %v615
  %v617 = vpop.f32.mrf.mxu0
  %v618 = vpop.f32.mrf.mxu0
  %v619 = vpop.f32.mrf.mxu0
  %620 = vdwg.mxu0
  %v621 = vadd.f32 %v576, %v616
  %v622 = vtanh.pop %v621
  %623 = vst.msk [vmem:[%s8 + $0x6] sm:$0x3] %vm334, %v575
  %624 = vst.msk [vmem:[%s64 + $0x8] sm:$0x3] %vm334, %v622
  %v625 = vld [vmem:[#allocation2 + $0x8] sm:$0x3]
  %v626 = vpack.c.bf16 %v575, %v575
  %v628 = vsel %vm139, %v626, 0
  %630 = vmatprep.subr.bf16.mxu0 0
  %631 = vmatpush1.bf16.msra.mxu0 0
  %632 = vmatprep.subr.bf16.mxu0 0
  %633 = vmatpush1.bf16.msra.mxu0 0
  %634 = vmatprep.subr.bf16.mxu0 0
  %635 = vmatpush1.bf16.msra.mxu0 0
  %636 = vmatprep.subr.bf16.mxu0 0
  %637 = vmatpush1.bf16.msra.mxu0 0
  %638 = vmatprep.subr.bf16.mxu0 0
  %639 = vmatpush1.bf16.msra.mxu0 0
  %640 = vmatprep.subr.bf16.mxu0 0
  %641 = vmatpush1.bf16.msra.mxu0 0
  %642 = vmatprep.subr.bf16.mxu0 0
  %643 = vmatpush1.bf16.msra.mxu0 %v227
  %644 = vmatprep.subr.bf16.mxu0 0
  %645 = vmatpush1.bf16.msra.mxu0 %v226
  %646 = vmatprep.subr.bf16.mxu0 0
  %647 = vmatpush2.bf16.msra.mxu0 0
  %648 = vmatprep.subr.bf16.mxu0 0
  %649 = vmatpush2.bf16.msra.mxu0 0
  %650 = vmatprep.subr.bf16.mxu0 0
  %651 = vmatpush2.bf16.msra.mxu0 0
  %652 = vmatprep.subr.bf16.mxu0 0
  %653 = vmatpush2.bf16.msra.mxu0 0
  %654 = vmatprep.subr.bf16.mxu0 0
  %655 = vmatpush2.bf16.msra.mxu0 0
  %656 = vmatprep.subr.bf16.mxu0 0
  %657 = vmatpush2.bf16.msra.mxu0 0
  %658 = vmatprep.subr.bf16.mxu0 0
  %659 = vmatpush2.bf16.msra.mxu0 0
  %660 = vmatprep.subr.bf16.mxu0 0
  %661 = vmatpush2.bf16.msra.mxu0 0
  %662 = vmatprep.mubr.bf16.mxu0 0
  %663 = vmatmul.mubr.bf16.gmra.mxu0 %v628
  %v664 = vpop.f32.mrf.mxu0
  %v665 = vadd.f32 0.0, %v664
  %v666 = vpop.f32.mrf.mxu0
  %v667 = vpop.f32.mrf.mxu0
  %v668 = vpop.f32.mrf.mxu0
  %669 = vdwg.mxu0
  %v670 = vadd.f32 %v625, %v665
  %v671 = vtanh.pop %v670
  %v672 = vld [vmem:[#allocation3 + $0x6] sm:$0x3]
  %v673 = vpack.c.bf16 %v622, %v622
  %v675 = vsel %vm139, %v673, 0
  %677 = vmatprep.subr.bf16.mxu0 0
  %678 = vmatpush1.bf16.msra.mxu0 0
  %679 = vmatprep.subr.bf16.mxu0 0
  %680 = vmatpush1.bf16.msra.mxu0 0
  %681 = vmatprep.subr.bf16.mxu0 0
  %682 = vmatpush1.bf16.msra.mxu0 0
  %683 = vmatprep.subr.bf16.mxu0 0
  %684 = vmatpush1.bf16.msra.mxu0 0
  %685 = vmatprep.subr.bf16.mxu0 0
  %686 = vmatpush1.bf16.msra.mxu0 0
  %687 = vmatprep.subr.bf16.mxu0 0
  %688 = vmatpush1.bf16.msra.mxu0 0
  %689 = vmatprep.subr.bf16.mxu0 0
  %690 = vmatpush1.bf16.msra.mxu0 %v286
  %691 = vmatprep.subr.bf16.mxu0 0
  %692 = vmatpush1.bf16.msra.mxu0 %v285
  %693 = vmatprep.subr.bf16.mxu0 0
  %694 = vmatpush2.bf16.msra.mxu0 0
  %695 = vmatprep.subr.bf16.mxu0 0
  %696 = vmatpush2.bf16.msra.mxu0 0
  %697 = vmatprep.subr.bf16.mxu0 0
  %698 = vmatpush2.bf16.msra.mxu0 0
  %699 = vmatprep.subr.bf16.mxu0 0
  %700 = vmatpush2.bf16.msra.mxu0 0
  %701 = vmatprep.subr.bf16.mxu0 0
  %702 = vmatpush2.bf16.msra.mxu0 0
  %703 = vmatprep.subr.bf16.mxu0 0
  %704 = vmatpush2.bf16.msra.mxu0 0
  %705 = vmatprep.subr.bf16.mxu0 0
  %706 = vmatpush2.bf16.msra.mxu0 0
  %707 = vmatprep.subr.bf16.mxu0 0
  %708 = vmatpush2.bf16.msra.mxu0 0
  %709 = vmatprep.mubr.bf16.mxu0 0
  %710 = vmatmul.mubr.bf16.gmra.mxu0 %v675
  %v711 = vpop.f32.mrf.mxu0
  %v712 = vadd.f32 0.0, %v711
  %v713 = vpop.f32.mrf.mxu0
  %v714 = vpop.f32.mrf.mxu0
  %v715 = vpop.f32.mrf.mxu0
  %716 = vdwg.mxu0
  %v717 = vadd.f32 %v672, %v712
  %v718 = vtanh.pop %v717
  %719 = vst.msk [vmem:[%s8 + $0x8] sm:$0x3] %vm334, %v671
  %720 = vst.msk [vmem:[%s64 + $0x6] sm:$0x3] %vm334, %v718
  %v721 = vld [vmem:[#allocation2 + $0xa] sm:$0x3]
  %v722 = vpack.c.bf16 %v671, %v671
  %v724 = vsel %vm139, %v722, 0
  %726 = vmatprep.subr.bf16.mxu0 0
  %727 = vmatpush1.bf16.msra.mxu0 0
  %728 = vmatprep.subr.bf16.mxu0 0
  %729 = vmatpush1.bf16.msra.mxu0 0
  %730 = vmatprep.subr.bf16.mxu0 0
  %731 = vmatpush1.bf16.msra.mxu0 0
  %732 = vmatprep.subr.bf16.mxu0 0
  %733 = vmatpush1.bf16.msra.mxu0 0
  %734 = vmatprep.subr.bf16.mxu0 0
  %735 = vmatpush1.bf16.msra.mxu0 0
  %736 = vmatprep.subr.bf16.mxu0 0
  %737 = vmatpush1.bf16.msra.mxu0 0
  %738 = vmatprep.subr.bf16.mxu0 0
  %739 = vmatpush1.bf16.msra.mxu0 %v227
  %740 = vmatprep.subr.bf16.mxu0 0
  %741 = vmatpush1.bf16.msra.mxu0 %v226
  %742 = vmatprep.subr.bf16.mxu0 0
  %743 = vmatpush2.bf16.msra.mxu0 0
  %744 = vmatprep.subr.bf16.mxu0 0
  %745 = vmatpush2.bf16.msra.mxu0 0
  %746 = vmatprep.subr.bf16.mxu0 0
  %747 = vmatpush2.bf16.msra.mxu0 0
  %748 = vmatprep.subr.bf16.mxu0 0
  %749 = vmatpush2.bf16.msra.mxu0 0
  %750 = vmatprep.subr.bf16.mxu0 0
  %751 = vmatpush2.bf16.msra.mxu0 0
  %752 = vmatprep.subr.bf16.mxu0 0
  %753 = vmatpush2.bf16.msra.mxu0 0
  %754 = vmatprep.subr.bf16.mxu0 0
  %755 = vmatpush2.bf16.msra.mxu0 0
  %756 = vmatprep.subr.bf16.mxu0 0
  %757 = vmatpush2.bf16.msra.mxu0 0
  %758 = vmatprep.mubr.bf16.mxu0 0
  %759 = vmatmul.mubr.bf16.gmra.mxu0 %v724
  %v760 = vpop.f32.mrf.mxu0
  %v761 = vadd.f32 0.0, %v760
  %v762 = vpop.f32.mrf.mxu0
  %v763 = vpop.f32.mrf.mxu0
  %v764 = vpop.f32.mrf.mxu0
  %765 = vdwg.mxu0
  %v766 = vadd.f32 %v721, %v761
  %v767 = vtanh.pop %v766
  %v768 = vld [vmem:[#allocation3 + $0x4] sm:$0x3]
  %v769 = vpack.c.bf16 %v718, %v718
  %v771 = vsel %vm139, %v769, 0
  %773 = vmatprep.subr.bf16.mxu0 0
  %774 = vmatpush1.bf16.msra.mxu0 0
  %775 = vmatprep.subr.bf16.mxu0 0
  %776 = vmatpush1.bf16.msra.mxu0 0
  %777 = vmatprep.subr.bf16.mxu0 0
  %778 = vmatpush1.bf16.msra.mxu0 0
  %779 = vmatprep.subr.bf16.mxu0 0
  %780 = vmatpush1.bf16.msra.mxu0 0
  %781 = vmatprep.subr.bf16.mxu0 0
  %782 = vmatpush1.bf16.msra.mxu0 0
  %783 = vmatprep.subr.bf16.mxu0 0
  %784 = vmatpush1.bf16.msra.mxu0 0
  %785 = vmatprep.subr.bf16.mxu0 0
  %786 = vmatpush1.bf16.msra.mxu0 %v286
  %787 = vmatprep.subr.bf16.mxu0 0
  %788 = vmatpush1.bf16.msra.mxu0 %v285
  %789 = vmatprep.subr.bf16.mxu0 0
  %790 = vmatpush2.bf16.msra.mxu0 0
  %791 = vmatprep.subr.bf16.mxu0 0
  %792 = vmatpush2.bf16.msra.mxu0 0
  %793 = vmatprep.subr.bf16.mxu0 0
  %794 = vmatpush2.bf16.msra.mxu0 0
  %795 = vmatprep.subr.bf16.mxu0 0
  %796 = vmatpush2.bf16.msra.mxu0 0
  %797 = vmatprep.subr.bf16.mxu0 0
  %798 = vmatpush2.bf16.msra.mxu0 0
  %799 = vmatprep.subr.bf16.mxu0 0
  %800 = vmatpush2.bf16.msra.mxu0 0
  %801 = vmatprep.subr.bf16.mxu0 0
  %802 = vmatpush2.bf16.msra.mxu0 0
  %803 = vmatprep.subr.bf16.mxu0 0
  %804 = vmatpush2.bf16.msra.mxu0 0
  %805 = vmatprep.mubr.bf16.mxu0 0
  %806 = vmatmul.mubr.bf16.gmra.mxu0 %v771
  %v807 = vpop.f32.mrf.mxu0
  %v808 = vadd.f32 0.0, %v807
  %v809 = vpop.f32.mrf.mxu0
  %v810 = vpop.f32.mrf.mxu0
  %v811 = vpop.f32.mrf.mxu0
  %812 = vdwg.mxu0
  %v813 = vadd.f32 %v768, %v808
  %v814 = vtanh.pop %v813
  %815 = vst.msk [vmem:[%s8 + $0xa] sm:$0x3] %vm334, %v767
  %816 = vst.msk [vmem:[%s64 + $0x4] sm:$0x3] %vm334, %v814
  %v817 = vld [vmem:[#allocation2 + $0xc] sm:$0x3]
  %v818 = vpack.c.bf16 %v767, %v767
  %v820 = vsel %vm139, %v818, 0
  %822 = vmatprep.subr.bf16.mxu0 0
  %823 = vmatpush1.bf16.msra.mxu0 0
  %824 = vmatprep.subr.bf16.mxu0 0
  %825 = vmatpush1.bf16.msra.mxu0 0
  %826 = vmatprep.subr.bf16.mxu0 0
  %827 = vmatpush1.bf16.msra.mxu0 0
  %828 = vmatprep.subr.bf16.mxu0 0
  %829 = vmatpush1.bf16.msra.mxu0 0
  %830 = vmatprep.subr.bf16.mxu0 0
  %831 = vmatpush1.bf16.msra.mxu0 0
  %832 = vmatprep.subr.bf16.mxu0 0
  %833 = vmatpush1.bf16.msra.mxu0 0
  %834 = vmatprep.subr.bf16.mxu0 0
  %835 = vmatpush1.bf16.msra.mxu0 %v227
  %836 = vmatprep.subr.bf16.mxu0 0
  %837 = vmatpush1.bf16.msra.mxu0 %v226
  %838 = vmatprep.subr.bf16.mxu0 0
  %839 = vmatpush2.bf16.msra.mxu0 0
  %840 = vmatprep.subr.bf16.mxu0 0
  %841 = vmatpush2.bf16.msra.mxu0 0
  %842 = vmatprep.subr.bf16.mxu0 0
  %843 = vmatpush2.bf16.msra.mxu0 0
  %844 = vmatprep.subr.bf16.mxu0 0
  %845 = vmatpush2.bf16.msra.mxu0 0
  %846 = vmatprep.subr.bf16.mxu0 0
  %847 = vmatpush2.bf16.msra.mxu0 0
  %848 = vmatprep.subr.bf16.mxu0 0
  %849 = vmatpush2.bf16.msra.mxu0 0
  %850 = vmatprep.subr.bf16.mxu0 0
  %851 = vmatpush2.bf16.msra.mxu0 0
  %852 = vmatprep.subr.bf16.mxu0 0
  %853 = vmatpush2.bf16.msra.mxu0 0
  %854 = vmatprep.mubr.bf16.mxu0 0
  %855 = vmatmul.mubr.bf16.gmra.mxu0 %v820
  %v856 = vpop.f32.mrf.mxu0
  %v857 = vadd.f32 0.0, %v856
  %v858 = vpop.f32.mrf.mxu0
  %v859 = vpop.f32.mrf.mxu0
  %v860 = vpop.f32.mrf.mxu0
  %861 = vdwg.mxu0
  %v862 = vadd.f32 %v817, %v857
  %v863 = vtanh.pop %v862
  %v864 = vld [vmem:[#allocation3 + $0x2] sm:$0x3]
  %v865 = vpack.c.bf16 %v814, %v814
  %v867 = vsel %vm139, %v865, 0
  %869 = vmatprep.subr.bf16.mxu0 0
  %870 = vmatpush1.bf16.msra.mxu0 0
  %871 = vmatprep.subr.bf16.mxu0 0
  %872 = vmatpush1.bf16.msra.mxu0 0
  %873 = vmatprep.subr.bf16.mxu0 0
  %874 = vmatpush1.bf16.msra.mxu0 0
  %875 = vmatprep.subr.bf16.mxu0 0
  %876 = vmatpush1.bf16.msra.mxu0 0
  %877 = vmatprep.subr.bf16.mxu0 0
  %878 = vmatpush1.bf16.msra.mxu0 0
  %879 = vmatprep.subr.bf16.mxu0 0
  %880 = vmatpush1.bf16.msra.mxu0 0
  %881 = vmatprep.subr.bf16.mxu0 0
  %882 = vmatpush1.bf16.msra.mxu0 %v286
  %883 = vmatprep.subr.bf16.mxu0 0
  %884 = vmatpush1.bf16.msra.mxu0 %v285
  %885 = vmatprep.subr.bf16.mxu0 0
  %886 = vmatpush2.bf16.msra.mxu0 0
  %887 = vmatprep.subr.bf16.mxu0 0
  %888 = vmatpush2.bf16.msra.mxu0 0
  %889 = vmatprep.subr.bf16.mxu0 0
  %890 = vmatpush2.bf16.msra.mxu0 0
  %891 = vmatprep.subr.bf16.mxu0 0
  %892 = vmatpush2.bf16.msra.mxu0 0
  %893 = vmatprep.subr.bf16.mxu0 0
  %894 = vmatpush2.bf16.msra.mxu0 0
  %895 = vmatprep.subr.bf16.mxu0 0
  %896 = vmatpush2.bf16.msra.mxu0 0
  %897 = vmatprep.subr.bf16.mxu0 0
  %898 = vmatpush2.bf16.msra.mxu0 0
  %899 = vmatprep.subr.bf16.mxu0 0
  %900 = vmatpush2.bf16.msra.mxu0 0
  %901 = vmatprep.mubr.bf16.mxu0 0
  %902 = vmatmul.mubr.bf16.gmra.mxu0 %v867
  %v903 = vpop.f32.mrf.mxu0
  %v904 = vadd.f32 0.0, %v903
  %v905 = vpop.f32.mrf.mxu0
  %v906 = vpop.f32.mrf.mxu0
  %v907 = vpop.f32.mrf.mxu0
  %908 = vdwg.mxu0
  %v909 = vadd.f32 %v864, %v904
  %v910 = vtanh.pop %v909
  %911 = vst.msk [vmem:[%s8 + $0xc] sm:$0x3] %vm334, %v863
  %912 = vst.msk [vmem:[%s64 + $0x2] sm:$0x3] %vm334, %v910
  %v913 = vld [vmem:[#allocation2 + $0xe] sm:$0x3]
  %v914 = vpack.c.bf16 %v863, %v863
  %v916 = vsel %vm139, %v914, 0
  %918 = vmatprep.subr.bf16.mxu0 0
  %919 = vmatpush1.bf16.msra.mxu0 0
  %920 = vmatprep.subr.bf16.mxu0 0
  %921 = vmatpush1.bf16.msra.mxu0 0
  %922 = vmatprep.subr.bf16.mxu0 0
  %923 = vmatpush1.bf16.msra.mxu0 0
  %924 = vmatprep.subr.bf16.mxu0 0
  %925 = vmatpush1.bf16.msra.mxu0 0
  %926 = vmatprep.subr.bf16.mxu0 0
  %927 = vmatpush1.bf16.msra.mxu0 0
  %928 = vmatprep.subr.bf16.mxu0 0
  %929 = vmatpush1.bf16.msra.mxu0 0
  %930 = vmatprep.subr.bf16.mxu0 0
  %931 = vmatpush1.bf16.msra.mxu0 %v227
  %932 = vmatprep.subr.bf16.mxu0 0
  %933 = vmatpush1.bf16.msra.mxu0 %v226
  %934 = vmatprep.subr.bf16.mxu0 0
  %935 = vmatpush2.bf16.msra.mxu0 0
  %936 = vmatprep.subr.bf16.mxu0 0
  %937 = vmatpush2.bf16.msra.mxu0 0
  %938 = vmatprep.subr.bf16.mxu0 0
  %939 = vmatpush2.bf16.msra.mxu0 0
  %940 = vmatprep.subr.bf16.mxu0 0
  %941 = vmatpush2.bf16.msra.mxu0 0
  %942 = vmatprep.subr.bf16.mxu0 0
  %943 = vmatpush2.bf16.msra.mxu0 0
  %944 = vmatprep.subr.bf16.mxu0 0
  %945 = vmatpush2.bf16.msra.mxu0 0
  %946 = vmatprep.subr.bf16.mxu0 0
  %947 = vmatpush2.bf16.msra.mxu0 0
  %948 = vmatprep.subr.bf16.mxu0 0
  %949 = vmatpush2.bf16.msra.mxu0 0
  %950 = vmatprep.mubr.bf16.mxu0 0
  %951 = vmatmul.mubr.bf16.gmra.mxu0 %v916
  %v952 = vpop.f32.mrf.mxu0
  %v953 = vadd.f32 0.0, %v952
  %v954 = vpop.f32.mrf.mxu0
  %v955 = vpop.f32.mrf.mxu0
  %v956 = vpop.f32.mrf.mxu0
  %957 = vdwg.mxu0
  %v958 = vadd.f32 %v913, %v953
  %v959 = vtanh.pop %v958
  %v960 = vld [vmem:[#allocation3] sm:$0x3]
  %v961 = vpack.c.bf16 %v910, %v910
  %v963 = vsel %vm139, %v961, 0
  %965 = vmatprep.subr.bf16.mxu0 0
  %966 = vmatpush1.bf16.msra.mxu0 0
  %967 = vmatprep.subr.bf16.mxu0 0
  %968 = vmatpush1.bf16.msra.mxu0 0
  %969 = vmatprep.subr.bf16.mxu0 0
  %970 = vmatpush1.bf16.msra.mxu0 0
  %971 = vmatprep.subr.bf16.mxu0 0
  %972 = vmatpush1.bf16.msra.mxu0 0
  %973 = vmatprep.subr.bf16.mxu0 0
  %974 = vmatpush1.bf16.msra.mxu0 0
  %975 = vmatprep.subr.bf16.mxu0 0
  %976 = vmatpush1.bf16.msra.mxu0 0
  %977 = vmatprep.subr.bf16.mxu0 0
  %978 = vmatpush1.bf16.msra.mxu0 %v286
  %979 = vmatprep.subr.bf16.mxu0 0
  %980 = vmatpush1.bf16.msra.mxu0 %v285
  %981 = vmatprep.subr.bf16.mxu0 0
  %982 = vmatpush2.bf16.msra.mxu0 0
  %983 = vmatprep.subr.bf16.mxu0 0
  %984 = vmatpush2.bf16.msra.mxu0 0
  %985 = vmatprep.subr.bf16.mxu0 0
  %986 = vmatpush2.bf16.msra.mxu0 0
  %987 = vmatprep.subr.bf16.mxu0 0
  %988 = vmatpush2.bf16.msra.mxu0 0
  %989 = vmatprep.subr.bf16.mxu0 0
  %990 = vmatpush2.bf16.msra.mxu0 0
  %991 = vmatprep.subr.bf16.mxu0 0
  %992 = vmatpush2.bf16.msra.mxu0 0
  %993 = vmatprep.subr.bf16.mxu0 0
  %994 = vmatpush2.bf16.msra.mxu0 0
  %995 = vmatprep.subr.bf16.mxu0 0
  %996 = vmatpush2.bf16.msra.mxu0 0
  %997 = vmatprep.mubr.bf16.mxu0 0
  %998 = vmatmul.mubr.bf16.gmra.mxu0 %v963
  %v999 = vpop.f32.mrf.mxu0
  %v1000 = vadd.f32 0.0, %v999
  %v1001 = vpop.f32.mrf.mxu0
  %v1002 = vpop.f32.mrf.mxu0
  %v1003 = vpop.f32.mrf.mxu0
  %1004 = vdwg.mxu0
  %v1005 = vadd.f32 %v960, %v1000
  %v1006 = vtanh.pop %v1005
  %1007 = vst.msk [vmem:[%s8 + $0xe] sm:$0x3] %vm334, %v959
  %1008 = vst.msk [vmem:[%s64] sm:$0x3] %vm334, %v1006
  %1009 = vst.msk [vmem:[#allocation4] sm:$0x3] %vm334, %v959
  %1010 = vst.msk [vmem:[#allocation5] sm:$0x3] %vm334, %v1006
  %s1011 = ssub.s32 0, 0
  %s1012 = smul.u32 2, %s1011
  %p1013 = scmp.lt.s32.totalorder %s1012, 1
  %s1014 = scalar_select %p1013, %s1012, 1
  %s1015 = smul.addr %s1014, 8
  %s1016 = scalar_lea.vmem %s9, %s1015
  // Predicated region
  $region38: #{bidirectional_rnn.1} parent=0 // pred_check
    _
  $region39: #{bidirectional_rnn.1} parent=0 // pred_check_branch
    %1018 = sbr.rel (0) target = $region41
  $region40: #{bidirectional_rnn.1} parent=0 // pred_region
    _
  $region41: #{bidirectional_rnn.1} parent=0 // pred_fallthru
    _
  // Predicated region
  $region42: #{bidirectional_rnn.1} parent=0 // pred_check
    _
  $region43: #{bidirectional_rnn.1} parent=0 // pred_check_branch
    %1020 = sbr.rel (0) target = $region45
  $region44: #{bidirectional_rnn.1} parent=0 // pred_region
    %s1021 = ssub.s32 0, 0
    %s1022 = smul.u32 2, %s1021
  $region45: #{bidirectional_rnn.1} parent=0 // pred_fallthru
    _
  // Predicated region
  $region46: #{bidirectional_rnn.1} parent=0 // pred_check
    _
  $region47: #{bidirectional_rnn.1} parent=0 // pred_check_branch
    %1024 = sbr.rel (0) target = $region49
  $region48: #{bidirectional_rnn.1} parent=0 // pred_region
    _
  $region49: #{bidirectional_rnn.1} parent=0 // pred_fallthru
    _
  // Predicated region
  $region50: #{bidirectional_rnn.1} parent=0 // pred_check
    _
  $region51: #{bidirectional_rnn.1} parent=0 // pred_check_branch
    %1026 = sbr.rel (0) target = $region53
  $region52: #{bidirectional_rnn.1} parent=0 // pred_region
    %s1027 = ssub.s32 0, 0
    %s1028 = smul.u32 2, %s1027
    %p1029 = scmp.lt.s32.totalorder %s1028, 1
    %s1030 = scalar_select %p1029, %s1028, 1
    %s1031 = smul.addr %s1030, 8
    %s1032 = scalar_lea.vmem %s9, %s1031
  $region53: #{bidirectional_rnn.1} parent=0 // pred_fallthru
    _

</llo_original>
